<compile_context>
chip_gen: v5e
topology: v5e:2x2
jax: 0.10.0
libtpu: 0.0.40
codegen_flags: <defaults>
</compile_context>

<pallas_src>
import functools

import jax
import jax.numpy as jnp
from jax.experimental import pallas as pl
from jax.experimental.pallas import tpu as pltpu


_VMEM_LIMIT = 32 << 20    # scoped-VMEM request (safe on v5e/v6e/v7x)
_VMEM_BUDGET = 24 << 20   # per-step working-set target (leaves headroom under the limit)


def _round_up(x, m):
    return ((x + m - 1) // m) * m


def _pick_lane_tile(m, per_lane_bytes, resident_bytes):
    """Largest lane tile (multiple of 128, <= 2048) whose double-buffered
    per-step working set fits the VMEM budget; never larger than padded M."""
    cap = _round_up(min(max(m, 1), 2048), 128)
    for cand in (2048, 1024, 512, 256, 128):
        if cand > cap:
            continue
        if 2 * cand * per_lane_bytes + resident_bytes <= _VMEM_BUDGET:
            return cand
    return 128


# --------------------------- Pallas kernels ---------------------------------

def _gemm_t_kernel(w_ref, a_ref, o_ref, *, relu):
    acc = jnp.dot(w_ref[...], a_ref[...], preferred_element_type=jnp.float32)
    if relu:
        acc = jnp.maximum(acc, 0.0)
    o_ref[...] = acc.astype(o_ref.dtype)


def _conv3_head_kernel(w_ref, a_ref, add_ref, fw_ref, fb_ref, o_ref, pool_ref,
                       *, inv_hw):
    """H2H conv GEMM + bf16 skip-add + ReLU, with the global average pool
    accumulated per-sample into VMEM scratch; 1x1 projection + bias on the
    final grid step. Grid = (sample, lane-tile); lane tiles never cross samples
    (padded lanes are all-zero so they add 0 to the pooled sum)."""
    n = pl.program_id(0)
    t = pl.program_id(1)

    @pl.when((n == 0) & (t == 0))
    def _():
        pool_ref[...] = jnp.zeros_like(pool_ref)

    acc = jnp.dot(w_ref[...], a_ref[...], preferred_element_type=jnp.float32)
    acc = jnp.maximum(acc + add_ref[...].astype(jnp.float32), 0.0)
    rs = jnp.sum(acc, axis=1, keepdims=True)                       # (C3, 1)
    col = jax.lax.broadcasted_iota(jnp.int32, pool_ref.shape, 1)   # (C3, N)
    pool_ref[...] = pool_ref[...] + jnp.where(col == n, rs, 0.0)

    @pl.when((n == pl.num_programs(0) - 1) & (t == pl.num_programs(1) - 1))
    def _():
        pooled = pool_ref[...] * inv_hw                            # (C3, N) f32
        o_ref[...] = (jnp.dot(fw_ref[...], pooled,
                              preferred_element_type=jnp.float32)
                      + fb_ref[...])


# --------------------------- GEMM wrappers ------------------------------------

def pallas_conv_gemm(w2, at, *, relu, out_dtype=jnp.bfloat16):
    """out^T (Cout, M) = w2 (Cout, Kp) @ at (Kp, M), fused ReLU, bf16 store."""
    Cout, Kp = w2.shape
    Kp2, M = at.shape
    assert Kp == Kp2
    out_isz = jnp.dtype(out_dtype).itemsize
    tn = _pick_lane_tile(M, Kp * 2 + Cout * out_isz, Cout * Kp * 2)
    Mp = _round_up(M, tn)
    steps = Mp // tn
    # Keep step count even at large grids so v7x's two TensorCores balance
    # (the extra tile is all-zero; <=12.5% waste, skipped for small grids).
    if steps >= 8 and steps % 2 == 1:
        Mp += tn
        steps += 1
    if Mp != M:
        at = jnp.pad(at, ((0, 0), (0, Mp - M)))
    out = pl.pallas_call(
        functools.partial(_gemm_t_kernel, relu=relu),
        out_shape=jax.ShapeDtypeStruct((Cout, Mp), out_dtype),
        grid=(steps,),
        in_specs=[pl.BlockSpec((Cout, Kp), lambda i: (0, 0)),
                  pl.BlockSpec((Kp, tn), lambda i: (0, i))],
        out_specs=pl.BlockSpec((Cout, tn), lambda i: (0, i)),
        compiler_params=pltpu.CompilerParams(
            dimension_semantics=("parallel",),
            vmem_limit_bytes=_VMEM_LIMIT),
    )(w2, at)
    return out[:, :M] if Mp != M else out


# --------------------------- conv glue (im2col, CNHW) -------------------------

def im2col_t(x_cnhw, KH, KW, stride, pad):
    """x (C,N,H,W) -> patches^T (C*KH*KW, N*Ho*Wo); lanes ordered (N, Ho, Wo)."""
    C, N, H, W = x_cnhw.shape
    xp = jnp.pad(x_cnhw, ((0, 0), (0, 0), (pad, pad), (pad, pad)))
    Hp, Wp = H + 2 * pad, W + 2 * pad
    Ho = (Hp - KH) // stride + 1
    Wo = (Wp - KW) // stride + 1
    cols = []
    for i in range(KH):
        for j in range(KW):
            cols.append(xp[:, :, i:i + stride * Ho:stride,
                           j:j + stride * Wo:stride])
    pat = jnp.stack(cols, axis=1)                 # (C, KH*KW, N, Ho, Wo)
    return pat.reshape(C * KH * KW, N * Ho * Wo), Ho, Wo


def _pad_k(w, at):
    """Pad the contraction dim only to the bf16 sublane pack (16)."""
    Cout, K = w.shape
    Kp = _round_up(K, 16)
    if Kp != K:
        at = jnp.pad(at, ((0, Kp - K), (0, 0)))
        w = jnp.pad(w, ((0, 0), (0, Kp - K)))
    return w, at


def conv_branch(x_cnhw, w, *, stride, pad, relu):
    """Bias-free zero-padded conv on a CNHW activation; bf16 in/out, fused ReLU."""
    Cout, Cin, KH, KW = w.shape
    at, Ho, Wo = im2col_t(x_cnhw.astype(jnp.bfloat16), KH, KW, stride, pad)
    w2, at = _pad_k(w.reshape(Cout, Cin * KH * KW).astype(jnp.bfloat16), at)
    out_t = pallas_conv_gemm(w2, at, relu=relu)            # (Cout, M) bf16
    return out_t.reshape(Cout, x_cnhw.shape[1], Ho, Wo)


def avg_pool2_cnhw(x):
    C, N, H, W = x.shape
    return x.reshape(C, N, H // 2, 2, W // 2, 2).mean(axis=(3, 5))


def upsample2_cnhw(x):
    return jnp.repeat(jnp.repeat(x, 2, axis=2), 2, axis=3)


# --------------------------- fused conv3 + pooling head -----------------------

def conv3_head(hf_cnhw, w3h, lf_o_cnhw, fc_w, fc_b):
    """'last' oct-conv hf branch + skip-add + ReLU + AdaptiveAvgPool2d(1) +
    Conv2d(C3, latent, 1) (+bias), all in one pallas_call."""
    C3, Cin, KH, KW = w3h.shape
    N = hf_cnhw.shape[1]
    latent = fc_w.shape[0]

    at, Ho, Wo = im2col_t(hf_cnhw.astype(jnp.bfloat16), KH, KW, 2, 1)
    w2, at = _pad_k(w3h.reshape(C3, Cin * KH * KW).astype(jnp.bfloat16), at)
    Kp = w2.shape[1]
    HW = Ho * Wo

    # 2x nearest upsample of the L2H branch (quarter size, bf16) -> add operand.
    # TODO(synk): do the upsample inside the epilogue (index-map the half-res
    # tile, duplicate lanes in-kernel) to cut this stream another 4x.
    add = upsample2_cnhw(lf_o_cnhw)                         # (C3, N, Ho, Wo) bf16

    resident = (C3 * Kp * 2 + latent * C3 * 4 + latent * 4
                + latent * N * 4 + C3 * N * 4)
    tn = _pick_lane_tile(HW, Kp * 2 + C3 * 2, resident)
    HWp = _round_up(HW, tn)
    tps = HWp // tn

    at = at.reshape(Kp, N, HW)
    add = add.reshape(C3, N, HW)
    if HWp != HW:
        at = jnp.pad(at, ((0, 0), (0, 0), (0, HWp - HW)))
        add = jnp.pad(add, ((0, 0), (0, 0), (0, HWp - HW)))
    at = at.reshape(Kp, N * HWp)
    add = add.reshape(C3, N * HWp)

    out = pl.pallas_call(
        functools.partial(_conv3_head_kernel, inv_hw=1.0 / HW),
        out_shape=jax.ShapeDtypeStruct((latent, N), jnp.float32),
        grid=(N, tps),
        in_specs=[pl.BlockSpec((C3, Kp), lambda n, t: (0, 0)),
                  pl.BlockSpec((Kp, tn), lambda n, t: (0, n * tps + t)),
                  pl.BlockSpec((C3, tn), lambda n, t: (0, n * tps + t)),
                  pl.BlockSpec((latent, C3), lambda n, t: (0, 0)),
                  pl.BlockSpec((latent, 1), lambda n, t: (0, 0))],
        out_specs=pl.BlockSpec((latent, N), lambda n, t: (0, 0)),
        scratch_shapes=[pltpu.VMEM((C3, N), jnp.float32)],
        compiler_params=pltpu.CompilerParams(
            dimension_semantics=("arbitrary", "arbitrary"),
            vmem_limit_bytes=_VMEM_LIMIT),
    )(w2, at, add,
      fc_w.astype(jnp.float32), fc_b.reshape(latent, 1).astype(jnp.float32))
    return jnp.transpose(out, (1, 0)).reshape(N, latent, 1, 1)


# --------------------------- ClassModelEncoder --------------------------------

def init_params(key, ind_im, dim, latent_dim):
    hf_c = dim // 2  # alpha_in = alpha_out = 0.5 channel split

    def w(k, shape, scale=0.05):
        return jax.random.normal(k, shape, jnp.float32) * scale

    ks = jax.random.split(key, 8)
    return {
        # conv1: 7x7, pad 3, stride 1, type 'first'
        "c1h": w(ks[0], (hf_c, ind_im, 7, 7)),
        "c1l": w(ks[1], (dim - hf_c, ind_im, 7, 7)),
        # conv2: 4x4, pad 1, stride 2, type 'normal' (dim -> dim*2)
        "c2h": w(ks[2], (dim, hf_c, 4, 4)),
        "c2l": w(ks[3], (dim, dim - hf_c, 4, 4)),
        # conv3: 4x4, pad 1, stride 2, type 'last' (dim*2 -> dim*4, merged)
        "c3h": w(ks[4], (dim * 4, dim, 4, 4)),
        "c3l": w(ks[5], (dim * 4, dim, 4, 4)),
        # final 1x1 conv (with bias): dim*4 -> latent_dim
        "fc_w": w(ks[6], (latent_dim, dim * 4)),
        "fc_b": w(ks[7], (latent_dim,)),
    }


def class_model_encoder_forward(params, x_nchw, alpha_in=0.5, alpha_out=0.5):
    # alpha_in/alpha_out only fix the static channel split baked into the
    # parameter shapes; bn1/bn2/bn3 are not called in the original forward.
    del alpha_in, alpha_out
    x = jnp.transpose(x_nchw, (1, 0, 2, 3))                       # CNHW, f32
    # conv1 ('first') + fused ReLU (re1)
    hf = conv_branch(x, params["c1h"], stride=1, pad=3, relu=True)
    lf = conv_branch(avg_pool2_cnhw(x), params["c1l"], stride=1, pad=3, relu=True)
    # conv2 ('normal') + fused ReLU (re2)
    hf = conv_branch(hf, params["c2h"], stride=2, pad=1, relu=True)
    lf = conv_branch(lf, params["c2l"], stride=2, pad=1, relu=True)
    # conv3 ('last'): out = H2H(hf) + up2(L2H(lf)); branch-add + ReLU (re3) +
    # AdaptiveAvgPool2d(1) + Conv2d(dim*4, latent, 1) fused into one kernel.
    lf_o = conv_branch(lf, params["c3l"], stride=2, pad=1, relu=False)
    return conv3_head(hf, params["c3h"], lf_o, params["fc_w"], params["fc_b"])


# --------------------------- pure-JAX reference --------------------------------

def _ref_conv(x, w, stride, pad):
    return jax.lax.conv_general_dilated(
        x.astype(jnp.bfloat16), w.astype(jnp.bfloat16),
        window_strides=(stride, stride),
        padding=((pad, pad), (pad, pad)),
        dimension_numbers=("NCHW", "OIHW", "NCHW"),
        preferred_element_type=jnp.float32)


def ref_forward(params, x):
    relu = lambda t: jnp.maximum(t, 0.0)
    N, Ci, H, W = x.shape
    xl = x.reshape(N, Ci, H // 2, 2, W // 2, 2).mean(axis=(3, 5))
    hf = relu(_ref_conv(x, params["c1h"], 1, 3))
    lf = relu(_ref_conv(xl, params["c1l"], 1, 3))
    hf = relu(_ref_conv(hf, params["c2h"], 2, 1))
    lf = relu(_ref_conv(lf, params["c2l"], 2, 1))
    # the kernel stores this branch in bf16 before the skip-add; mirror that
    # (conv operands are already rounded to bf16 everywhere above).
    lo = _ref_conv(lf, params["c3l"], 2, 1).astype(jnp.bfloat16)
    lo = jnp.repeat(jnp.repeat(lo, 2, axis=2), 2, axis=3).astype(jnp.float32)
    out = relu(_ref_conv(hf, params["c3h"], 2, 1) + lo)
    pooled = out.mean(axis=(2, 3))                               # (N, C) f32
    y = pooled @ params["fc_w"].T + params["fc_b"]
    return y.reshape(N, -1, 1, 1)


# --------------------------- driver --------------------------------------------

if __name__ == "__main__":
    key = jax.random.PRNGKey(0)
    k_params, k_x = jax.random.split(key)

    batch, ind_im, H, W = 2, 4, 16, 16
    dim, latent_dim = 16, 64

    params = init_params(k_params, ind_im=ind_im, dim=dim, latent_dim=latent_dim)
    x = jax.random.normal(k_x, (batch, ind_im, H, W), jnp.float32)

    fwd = jax.jit(class_model_encoder_forward)
    out = fwd(params, x, 0.5, 0.5)
    jax.block_until_ready(out)

    assert out.shape == (batch, latent_dim, 1, 1), out.shape
    assert bool(jnp.all(jnp.isfinite(out)))

    # correctness check against an XLA reference using the same bf16 operand
    # rounding + f32 accumulation
    ref = ref_forward(params, x)
    err = float(jnp.max(jnp.abs(out - ref)))
    assert bool(jnp.allclose(out, ref, atol=5e-3, rtol=5e-3)), err

    print("KERNEL_OK")
</pallas_src>

<mosaic_0001>
module attributes {stable_mosaic.version = 11 : i64} {
  func.func @_gemm_t_kernel(%arg0: i32, %arg1: memref<8x208xbf16, #tpu.memory_space<vmem>>, %arg2: memref<208x128xbf16, #tpu.memory_space<vmem>>, %arg3: memref<8x128xbf16, #tpu.memory_space<vmem>>) attributes {dimension_semantics = [#tpu.dimension_semantics<parallel>], iteration_bounds = array<i64: 1>, scalar_prefetch = 0 : i64, scratch_operands = 0 : i64, tpu.core_type = #tpu.core_type<tc>, window_params = [{pipeline_mode = #tpu.pipeline_mode<synchronous>, transform_indices = @transform_0, window_bounds = array<i64: 8, 208>}, {transform_indices = @transform_1, window_bounds = array<i64: 208, 128>}, {transform_indices = @transform_2, window_bounds = array<i64: 8, 128>}]} {
    %c0 = arith.constant 0 : index
    %c0_0 = arith.constant 0 : index
    %0 = vector.load %arg1[%c0, %c0_0] : memref<8x208xbf16, #tpu.memory_space<vmem>>, vector<8x208xbf16>
    %c0_1 = arith.constant 0 : index
    %c0_2 = arith.constant 0 : index
    %1 = vector.load %arg2[%c0_1, %c0_2] : memref<208x128xbf16, #tpu.memory_space<vmem>>, vector<208x128xbf16>
    %cst = arith.constant dense<0.000000e+00> : vector<8x128xf32>
    %2 = tpu.matmul %0, %1, %cst {dimension_numbers = #tpu.dot_dimension_numbers<[1], [0], [0], [1], [0, 0, 1, 1], [], []>} : vector<8x208xbf16>, vector<208x128xbf16>, vector<8x128xf32> -> vector<8x128xf32>
    %cst_3 = arith.constant 0.000000e+00 : f32
    %3 = vector.broadcast %cst_3 : f32 to vector<8x128xf32>
    %4 = arith.maximumf %2, %3 : vector<8x128xf32>
    %5 = arith.truncf %4 : vector<8x128xf32> to vector<8x128xbf16>
    %c0_4 = arith.constant 0 : index
    %c0_5 = arith.constant 0 : index
    %6 = vector.load %arg3[%c0_4, %c0_5] : memref<8x128xbf16, #tpu.memory_space<vmem>>, vector<8x128xbf16>
    tpu.vector_store %arg3[%c0_4, %c0_5], %5 {strides = array<i32>} : memref<8x128xbf16, #tpu.memory_space<vmem>>, vector<8x128xbf16>,
    return
  }
  func.func @transform_0(%arg0: i32) -> (i32, i32) {
    %c0_i32 = arith.constant 0 : i32
    %c0_i32_0 = arith.constant 0 : i32
    %c0_i32_1 = arith.constant 0 : i32
    return %c0_i32, %c0_i32_0 : i32, i32
  }
  func.func @transform_1(%arg0: i32) -> (i32, i32) {
    %c0_i32 = arith.constant 0 : i32
    %c0_i32_0 = arith.constant 0 : i32
    return %c0_i32, %arg0 : i32, i32
  }
  func.func @transform_2(%arg0: i32) -> (i32, i32) {
    %c0_i32 = arith.constant 0 : i32
    %c0_i32_0 = arith.constant 0 : i32
    return %c0_i32, %arg0 : i32, i32
  }
}

module attributes {stable_mosaic.version = 11 : i64} {
  func.func @_gemm_t_kernel(%arg0: i32, %arg1: memref<16x128xbf16, #tpu.memory_space<vmem>>, %arg2: memref<128x128xbf16, #tpu.memory_space<vmem>>, %arg3: memref<16x128xbf16, #tpu.memory_space<vmem>>) attributes {dimension_semantics = [#tpu.dimension_semantics<parallel>], iteration_bounds = array<i64: 1>, scalar_prefetch = 0 : i64, scratch_operands = 0 : i64, tpu.core_type = #tpu.core_type<tc>, window_params = [{pipeline_mode = #tpu.pipeline_mode<synchronous>, transform_indices = @transform_0, window_bounds = array<i64: 16, 128>}, {transform_indices = @transform_1, window_bounds = array<i64: 128, 128>}, {transform_indices = @transform_2, window_bounds = array<i64: 16, 128>}]} {
    %c0 = arith.constant 0 : index
    %c0_0 = arith.constant 0 : index
    %0 = vector.load %arg1[%c0, %c0_0] : memref<16x128xbf16, #tpu.memory_space<vmem>>, vector<16x128xbf16>
    %c0_1 = arith.constant 0 : index
    %c0_2 = arith.constant 0 : index
    %1 = vector.load %arg2[%c0_1, %c0_2] : memref<128x128xbf16, #tpu.memory_space<vmem>>, vector<128x128xbf16>
    %cst = arith.constant dense<0.000000e+00> : vector<16x128xf32>
    %2 = tpu.matmul %0, %1, %cst {dimension_numbers = #tpu.dot_dimension_numbers<[1], [0], [0], [1], [0, 0, 1, 1], [], []>} : vector<16x128xbf16>, vector<128x128xbf16>, vector<16x128xf32> -> vector<16x128xf32>
    %cst_3 = arith.constant 0.000000e+00 : f32
    %3 = vector.broadcast %cst_3 : f32 to vector<16x128xf32>
    %4 = arith.maximumf %2, %3 : vector<16x128xf32>
    %5 = arith.truncf %4 : vector<16x128xf32> to vector<16x128xbf16>
    %c0_4 = arith.constant 0 : index
    %c0_5 = arith.constant 0 : index
    %6 = vector.load %arg3[%c0_4, %c0_5] : memref<16x128xbf16, #tpu.memory_space<vmem>>, vector<16x128xbf16>
    tpu.vector_store %arg3[%c0_4, %c0_5], %5 {strides = array<i32>} : memref<16x128xbf16, #tpu.memory_space<vmem>>, vector<16x128xbf16>,
    return
  }
  func.func @transform_0(%arg0: i32) -> (i32, i32) {
    %c0_i32 = arith.constant 0 : i32
    %c0_i32_0 = arith.constant 0 : i32
    %c0_i32_1 = arith.constant 0 : i32
    return %c0_i32, %c0_i32_0 : i32, i32
  }
  func.func @transform_1(%arg0: i32) -> (i32, i32) {
    %c0_i32 = arith.constant 0 : i32
    %c0_i32_0 = arith.constant 0 : i32
    return %c0_i32, %arg0 : i32, i32
  }
  func.func @transform_2(%arg0: i32) -> (i32, i32) {
    %c0_i32 = arith.constant 0 : i32
    %c0_i32_0 = arith.constant 0 : i32
    return %c0_i32, %arg0 : i32, i32
  }
}

module attributes {stable_mosaic.version = 11 : i64} {
  func.func @_gemm_t_kernel(%arg0: i32, %arg1: memref<64x256xbf16, #tpu.memory_space<vmem>>, %arg2: memref<256x128xbf16, #tpu.memory_space<vmem>>, %arg3: memref<64x128xbf16, #tpu.memory_space<vmem>>) attributes {dimension_semantics = [#tpu.dimension_semantics<parallel>], iteration_bounds = array<i64: 1>, scalar_prefetch = 0 : i64, scratch_operands = 0 : i64, tpu.core_type = #tpu.core_type<tc>, window_params = [{pipeline_mode = #tpu.pipeline_mode<synchronous>, transform_indices = @transform_0, window_bounds = array<i64: 64, 256>}, {transform_indices = @transform_1, window_bounds = array<i64: 256, 128>}, {transform_indices = @transform_2, window_bounds = array<i64: 64, 128>}]} {
    %c0 = arith.constant 0 : index
    %c0_0 = arith.constant 0 : index
    %0 = vector.load %arg1[%c0, %c0_0] : memref<64x256xbf16, #tpu.memory_space<vmem>>, vector<64x256xbf16>
    %c0_1 = arith.constant 0 : index
    %c0_2 = arith.constant 0 : index
    %1 = vector.load %arg2[%c0_1, %c0_2] : memref<256x128xbf16, #tpu.memory_space<vmem>>, vector<256x128xbf16>
    %cst = arith.constant dense<0.000000e+00> : vector<64x128xf32>
    %2 = tpu.matmul %0, %1, %cst {dimension_numbers = #tpu.dot_dimension_numbers<[1], [0], [0], [1], [0, 0, 1, 1], [], []>} : vector<64x256xbf16>, vector<256x128xbf16>, vector<64x128xf32> -> vector<64x128xf32>
    %3 = arith.truncf %2 : vector<64x128xf32> to vector<64x128xbf16>
    %c0_3 = arith.constant 0 : index
    %c0_4 = arith.constant 0 : index
    %4 = vector.load %arg3[%c0_3, %c0_4] : memref<64x128xbf16, #tpu.memory_space<vmem>>, vector<64x128xbf16>
    tpu.vector_store %arg3[%c0_3, %c0_4], %3 {strides = array<i32>} : memref<64x128xbf16, #tpu.memory_space<vmem>>, vector<64x128xbf16>,
    return
  }
  func.func @transform_0(%arg0: i32) -> (i32, i32) {
    %c0_i32 = arith.constant 0 : i32
    %c0_i32_0 = arith.constant 0 : i32
    %c0_i32_1 = arith.constant 0 : i32
    return %c0_i32, %c0_i32_0 : i32, i32
  }
  func.func @transform_1(%arg0: i32) -> (i32, i32) {
    %c0_i32 = arith.constant 0 : i32
    %c0_i32_0 = arith.constant 0 : i32
    return %c0_i32, %arg0 : i32, i32
  }
  func.func @transform_2(%arg0: i32) -> (i32, i32) {
    %c0_i32 = arith.constant 0 : i32
    %c0_i32_0 = arith.constant 0 : i32
    return %c0_i32, %arg0 : i32, i32
  }
}

module attributes {stable_mosaic.version = 11 : i64} {
  func.func @_gemm_t_kernel(%arg0: i32, %arg1: memref<8x208xbf16, #tpu.memory_space<vmem>>, %arg2: memref<208x512xbf16, #tpu.memory_space<vmem>>, %arg3: memref<8x512xbf16, #tpu.memory_space<vmem>>) attributes {dimension_semantics = [#tpu.dimension_semantics<parallel>], iteration_bounds = array<i64: 1>, scalar_prefetch = 0 : i64, scratch_operands = 0 : i64, tpu.core_type = #tpu.core_type<tc>, window_params = [{pipeline_mode = #tpu.pipeline_mode<synchronous>, transform_indices = @transform_0, window_bounds = array<i64: 8, 208>}, {transform_indices = @transform_1, window_bounds = array<i64: 208, 512>}, {transform_indices = @transform_2, window_bounds = array<i64: 8, 512>}]} {
    %c0 = arith.constant 0 : index
    %c0_0 = arith.constant 0 : index
    %0 = vector.load %arg1[%c0, %c0_0] : memref<8x208xbf16, #tpu.memory_space<vmem>>, vector<8x208xbf16>
    %c0_1 = arith.constant 0 : index
    %c0_2 = arith.constant 0 : index
    %1 = vector.load %arg2[%c0_1, %c0_2] : memref<208x512xbf16, #tpu.memory_space<vmem>>, vector<208x512xbf16>
    %cst = arith.constant dense<0.000000e+00> : vector<8x512xf32>
    %2 = tpu.matmul %0, %1, %cst {dimension_numbers = #tpu.dot_dimension_numbers<[1], [0], [0], [1], [0, 0, 1, 1], [], []>} : vector<8x208xbf16>, vector<208x512xbf16>, vector<8x512xf32> -> vector<8x512xf32>
    %cst_3 = arith.constant 0.000000e+00 : f32
    %3 = vector.broadcast %cst_3 : f32 to vector<8x512xf32>
    %4 = arith.maximumf %2, %3 : vector<8x512xf32>
    %5 = arith.truncf %4 : vector<8x512xf32> to vector<8x512xbf16>
    %c0_4 = arith.constant 0 : index
    %c0_5 = arith.constant 0 : index
    %6 = vector.load %arg3[%c0_4, %c0_5] : memref<8x512xbf16, #tpu.memory_space<vmem>>, vector<8x512xbf16>
    tpu.vector_store %arg3[%c0_4, %c0_5], %5 {strides = array<i32>} : memref<8x512xbf16, #tpu.memory_space<vmem>>, vector<8x512xbf16>,
    return
  }
  func.func @transform_0(%arg0: i32) -> (i32, i32) {
    %c0_i32 = arith.constant 0 : i32
    %c0_i32_0 = arith.constant 0 : i32
    %c0_i32_1 = arith.constant 0 : i32
    return %c0_i32, %c0_i32_0 : i32, i32
  }
  func.func @transform_1(%arg0: i32) -> (i32, i32) {
    %c0_i32 = arith.constant 0 : i32
    %c0_i32_0 = arith.constant 0 : i32
    return %c0_i32, %arg0 : i32, i32
  }
  func.func @transform_2(%arg0: i32) -> (i32, i32) {
    %c0_i32 = arith.constant 0 : i32
    %c0_i32_0 = arith.constant 0 : i32
    return %c0_i32, %arg0 : i32, i32
  }
}

module attributes {stable_mosaic.version = 11 : i64} {
  func.func @_conv3_head_kernel(%arg0: i32, %arg1: i32, %arg2: memref<64x256xbf16, #tpu.memory_space<vmem>>, %arg3: memref<256x128xbf16, #tpu.memory_space<vmem>>, %arg4: memref<64x128xbf16, #tpu.memory_space<vmem>>, %arg5: memref<64x64xf32, #tpu.memory_space<vmem>>, %arg6: memref<64x1xf32, #tpu.memory_space<vmem>>, %arg7: memref<64x2xf32, #tpu.memory_space<vmem>>, %arg8: memref<64x2xf32, #tpu.memory_space<vmem>>) attributes {dimension_semantics = [#tpu.dimension_semantics<arbitrary>, #tpu.dimension_semantics<arbitrary>], iteration_bounds = array<i64: 2, 1>, scalar_prefetch = 0 : i64, scratch_operands = 1 : i64, tpu.core_type = #tpu.core_type<tc>, window_params = [{pipeline_mode = #tpu.pipeline_mode<synchronous>, transform_indices = @transform_0, window_bounds = array<i64: 64, 256>}, {transform_indices = @transform_1, window_bounds = array<i64: 256, 128>}, {transform_indices = @transform_2, window_bounds = array<i64: 64, 128>}, {pipeline_mode = #tpu.pipeline_mode<synchronous>, transform_indices = @transform_3, window_bounds = array<i64: 64, 64>}, {pipeline_mode = #tpu.pipeline_mode<synchronous>, transform_indices = @transform_4, window_bounds = array<i64: 64, 1>}, {pipeline_mode = #tpu.pipeline_mode<synchronous>, transform_indices = @transform_5, window_bounds = array<i64: 64, 2>}]} {
    %c0_i32 = arith.constant 0 : i32
    %0 = arith.cmpi eq, %arg0, %c0_i32 : i32
    %c0_i32_0 = arith.constant 0 : i32
    %1 = arith.cmpi eq, %arg1, %c0_i32_0 : i32
    %2 = arith.andi %0, %1 : i1
    %3 = arith.extui %2 : i1 to i32
    %c0_i32_1 = arith.constant 0 : i32
    %4 = arith.cmpi ne, %3, %c0_i32_1 : i32
    scf.if %4 {
      %cst_16 = arith.constant 0.000000e+00 : f32
      %30 = vector.broadcast %cst_16 : f32 to vector<64x2xf32>
      %c0_17 = arith.constant 0 : index
      %c0_18 = arith.constant 0 : index
      %31 = vector.load %arg8[%c0_17, %c0_18] : memref<64x2xf32, #tpu.memory_space<vmem>>, vector<64x2xf32>
      tpu.vector_store %arg8[%c0_17, %c0_18], %30 {strides = array<i32>} : memref<64x2xf32, #tpu.memory_space<vmem>>, vector<64x2xf32>,
    } else {
    }
    %c0 = arith.constant 0 : index
    %c0_2 = arith.constant 0 : index
    %5 = vector.load %arg2[%c0, %c0_2] : memref<64x256xbf16, #tpu.memory_space<vmem>>, vector<64x256xbf16>
    %c0_3 = arith.constant 0 : index
    %c0_4 = arith.constant 0 : index
    %6 = vector.load %arg3[%c0_3, %c0_4] : memref<256x128xbf16, #tpu.memory_space<vmem>>, vector<256x128xbf16>
    %cst = arith.constant dense<0.000000e+00> : vector<64x128xf32>
    %7 = tpu.matmul %5, %6, %cst {dimension_numbers = #tpu.dot_dimension_numbers<[1], [0], [0], [1], [0, 0, 1, 1], [], []>} : vector<64x256xbf16>, vector<256x128xbf16>, vector<64x128xf32> -> vector<64x128xf32>
    %c0_5 = arith.constant 0 : index
    %c0_6 = arith.constant 0 : index
    %8 = vector.load %arg4[%c0_5, %c0_6] : memref<64x128xbf16, #tpu.memory_space<vmem>>, vector<64x128xbf16>
    %9 = arith.extf %8 : vector<64x128xbf16> to vector<64x128xf32>
    %10 = arith.addf %7, %9 : vector<64x128xf32>
    %cst_7 = arith.constant 0.000000e+00 : f32
    %11 = vector.broadcast %cst_7 : f32 to vector<64x128xf32>
    %12 = arith.maximumf %10, %11 : vector<64x128xf32>
    %cst_8 = arith.constant dense<0.000000e+00> : vector<64xf32>
    %13 = vector.multi_reduction <add>, %12, %cst_8 [1] : vector<64x128xf32> to vector<64xf32>
    %14 = vector.shape_cast %13 : vector<64xf32> to vector<64x1xf32>
    %15 = tpu.iota {dimensions = array<i32: 1>} : vector<64x2xi32>
    %c0_9 = arith.constant 0 : index
    %c0_10 = arith.constant 0 : index
    %16 = vector.load %arg8[%c0_9, %c0_10] : memref<64x2xf32, #tpu.memory_space<vmem>>, vector<64x2xf32>
    %17 = vector.broadcast %arg0 : i32 to vector<64x2xi32>
    %18 = arith.cmpi eq, %15, %17 : vector<64x2xi32>
    %cst_11 = arith.constant 0.000000e+00 : f32
    %19 = vector.shape_cast %14 : vector<64x1xf32> to vector<64x1xf32>
    %20 = vector.broadcast %19 : vector<64x1xf32> to vector<64x2xf32>
    %21 = vector.broadcast %cst_11 : f32 to vector<64x2xf32>
    %22 = arith.select %18, %20, %21 : vector<64x2xi1>, vector<64x2xf32>
    %23 = arith.addf %16, %22 : vector<64x2xf32>
    %c0_12 = arith.constant 0 : index
    %c0_13 = arith.constant 0 : index
    %24 = vector.load %arg8[%c0_12, %c0_13] : memref<64x2xf32, #tpu.memory_space<vmem>>, vector<64x2xf32>
    tpu.vector_store %arg8[%c0_12, %c0_13], %23 {strides = array<i32>} : memref<64x2xf32, #tpu.memory_space<vmem>>, vector<64x2xf32>,
    %c1_i32 = arith.constant 1 : i32
    %25 = arith.cmpi eq, %arg0, %c1_i32 : i32
    %c0_i32_14 = arith.constant 0 : i32
    %26 = arith.cmpi eq, %arg1, %c0_i32_14 : i32
    %27 = arith.andi %25, %26 : i1
    %28 = arith.extui %27 : i1 to i32
    %c0_i32_15 = arith.constant 0 : i32
    %29 = arith.cmpi ne, %28, %c0_i32_15 : i32
    scf.if %29 {
      %c0_16 = arith.constant 0 : index
      %c0_17 = arith.constant 0 : index
      %30 = vector.load %arg8[%c0_16, %c0_17] : memref<64x2xf32, #tpu.memory_space<vmem>>, vector<64x2xf32>
      %cst_18 = arith.constant 6.250000e-02 : f32
      %31 = vector.broadcast %cst_18 : f32 to vector<64x2xf32>
      %32 = arith.mulf %30, %31 : vector<64x2xf32>
      %c0_19 = arith.constant 0 : index
      %c0_20 = arith.constant 0 : index
      %33 = vector.load %arg5[%c0_19, %c0_20] : memref<64x64xf32, #tpu.memory_space<vmem>>, vector<64x64xf32>
      %cst_21 = arith.constant dense<0.000000e+00> : vector<64x2xf32>
      %34 = tpu.matmul %33, %32, %cst_21 {dimension_numbers = #tpu.dot_dimension_numbers<[1], [0], [0], [1], [0, 0, 1, 1], [], []>} : vector<64x64xf32>, vector<64x2xf32>, vector<64x2xf32> -> vector<64x2xf32>
      %c0_22 = arith.constant 0 : index
      %c0_23 = arith.constant 0 : index
      %35 = vector.load %arg6[%c0_22, %c0_23] : memref<64x1xf32, #tpu.memory_space<vmem>>, vector<64x1xf32>
      %36 = vector.broadcast %35 : vector<64x1xf32> to vector<64x2xf32>
      %37 = arith.addf %34, %36 : vector<64x2xf32>
      %c0_24 = arith.constant 0 : index
      %c0_25 = arith.constant 0 : index
      %38 = vector.load %arg7[%c0_24, %c0_25] : memref<64x2xf32, #tpu.memory_space<vmem>>, vector<64x2xf32>
      tpu.vector_store %arg7[%c0_24, %c0_25], %37 {strides = array<i32>} : memref<64x2xf32, #tpu.memory_space<vmem>>, vector<64x2xf32>,
    } else {
    }
    return
  }
  func.func @transform_0(%arg0: i32, %arg1: i32) -> (i32, i32) {
    %c0_i32 = arith.constant 0 : i32
    %c0_i32_0 = arith.constant 0 : i32
    %c0_i32_1 = arith.constant 0 : i32
    return %c0_i32, %c0_i32_0 : i32, i32
  }
  func.func @transform_1(%arg0: i32, %arg1: i32) -> (i32, i32) {
    %c1_i32 = arith.constant 1 : i32
    %0 = arith.muli %arg0, %c1_i32 : i32
    %1 = arith.addi %0, %arg1 : i32
    %c0_i32 = arith.constant 0 : i32
    %c0_i32_0 = arith.constant 0 : i32
    return %c0_i32, %1 : i32, i32
  }
  func.func @transform_2(%arg0: i32, %arg1: i32) -> (i32, i32) {
    %c1_i32 = arith.constant 1 : i32
    %0 = arith.muli %arg0, %c1_i32 : i32
    %1 = arith.addi %0, %arg1 : i32
    %c0_i32 = arith.constant 0 : i32
    %c0_i32_0 = arith.constant 0 : i32
    return %c0_i32, %1 : i32, i32
  }
  func.func @transform_3(%arg0: i32, %arg1: i32) -> (i32, i32) {
    %c0_i32 = arith.constant 0 : i32
    %c0_i32_0 = arith.constant 0 : i32
    %c0_i32_1 = arith.constant 0 : i32
    return %c0_i32, %c0_i32_0 : i32, i32
  }
  func.func @transform_4(%arg0: i32, %arg1: i32) -> (i32, i32) {
    %c0_i32 = arith.constant 0 : i32
    %c0_i32_0 = arith.constant 0 : i32
    %c0_i32_1 = arith.constant 0 : i32
    return %c0_i32, %c0_i32_0 : i32, i32
  }
  func.func @transform_5(%arg0: i32, %arg1: i32) -> (i32, i32) {
    %c0_i32 = arith.constant 0 : i32
    %c0_i32_0 = arith.constant 0 : i32
    %c0_i32_1 = arith.constant 0 : i32
    return %c0_i32, %c0_i32_0 : i32, i32
  }
}

</mosaic_0001>

<llo_original>
// kernel: class_model_encoder_forward.7
$region0: #{class_model_encoder_forward.7}
  #allocation0 [shape = 'u32[]', space=smem, size = 0x4, offset = 0x4, fixed_abs, tag = 'smem constant byte address 0x4 - core index']
  #allocation1 [shape = 'u32[72,128]{1,0:T(1,128)}', space=vmem, size = 0x9000, scoped, tag = 'internal scratch']
  %s0 = inlined_call_operand.vmem [shape: bf16[8,208], index: 0, kind: input, shape index: {}]
  %s1 = inlined_call_operand.vmem [shape: bf16[208,128], index: 1, kind: input, shape index: {}]
  %s2 = inlined_call_operand.vmem [shape: bf16[8,128], index: 2, kind: output, shape index: {}]
  %s3 = sld [smem:[#allocation0]]
  $region18: #{class_model_encoder_forward.7} parent=0
    _
  %s5 = ssub.s32 1, %s3
  %s6 = scalar_select 0, %s5, %s3
  // Predicated region
  $region2: #{class_model_encoder_forward.7} parent=0 // pred_check
    _
  $region3: #{class_model_encoder_forward.7} parent=0 // pred_check_branch
    %8 = sbr.rel (0) target = $region5
  $region4: #{class_model_encoder_forward.7} parent=0 // pred_region
    _
  $region5: #{class_model_encoder_forward.7} parent=0 // pred_fallthru
    _
  // Predicated region
  $region6: #{class_model_encoder_forward.7} parent=0 // pred_check
    _
  $region7: #{class_model_encoder_forward.7} parent=0 // pred_check_branch
    %10 = sbr.rel (0) target = $region9
  $region8: #{class_model_encoder_forward.7} parent=0 // pred_region
    _
  $region9: #{class_model_encoder_forward.7} parent=0 // pred_fallthru
    _
  %v12 = vld [vmem:[%s0] sm:$0xff]
  %v13 = vld [vmem:[%s1] sm:$0xf]
  %v14 = vld [vmem:[%s1 + $0x4] sm:$0xf]
  %v15 = vld [vmem:[%s1 + $0x8] sm:$0xf]
  %v16 = vld [vmem:[%s1 + $0xc] sm:$0xf]
  %v17 = vld [vmem:[%s1 + $0x10] sm:$0xf]
  %v18 = vld [vmem:[%s1 + $0x14] sm:$0xf]
  %v19 = vld [vmem:[%s1 + $0x18] sm:$0xf]
  %v20 = vld [vmem:[%s1 + $0x1c] sm:$0xf]
  %v21 = vld [vmem:[%s1 + $0x20] sm:$0xf]
  %v22 = vld [vmem:[%s1 + $0x24] sm:$0xf]
  %v23 = vld [vmem:[%s1 + $0x28] sm:$0xf]
  %v24 = vld [vmem:[%s1 + $0x2c] sm:$0xf]
  %v25 = vld [vmem:[%s1 + $0x30] sm:$0xf]
  %v26 = vld [vmem:[%s1 + $0x34] sm:$0xf]
  %v27 = vld [vmem:[%s1 + $0x38] sm:$0xf]
  %v28 = vld [vmem:[%s1 + $0x3c] sm:$0xf]
  %v29 = vld [vmem:[%s1 + $0x40] sm:$0xf]
  %v30 = vld [vmem:[%s1 + $0x44] sm:$0xf]
  %v31 = vld [vmem:[%s1 + $0x48] sm:$0xf]
  %v32 = vld [vmem:[%s1 + $0x4c] sm:$0xf]
  %v33 = vld [vmem:[%s1 + $0x50] sm:$0xf]
  %v34 = vld [vmem:[%s1 + $0x54] sm:$0xf]
  %v35 = vld [vmem:[%s1 + $0x58] sm:$0xf]
  %v36 = vld [vmem:[%s1 + $0x5c] sm:$0xf]
  %v37 = vld [vmem:[%s1 + $0x60] sm:$0xf]
  %v38 = vld [vmem:[%s1 + $0x64] sm:$0xf]
  %v40 = vunpack.c.l.b16 %v12
  %v41 = vunpack.c.h.b16 %v12
  %v42 = vpack.c.b16 %v40, %v40
  %v43 = vpack.c.b16 %v41, %v41
  %v71 = vunpack.c.l.b16 %v13
  %v72 = vunpack.c.l.b16 %v14
  %v73 = vunpack.c.l.b16 %v15
  %v74 = vunpack.c.l.b16 %v16
  %v75 = vunpack.c.l.b16 %v17
  %v76 = vunpack.c.l.b16 %v18
  %v77 = vunpack.c.l.b16 %v19
  %v78 = vunpack.c.l.b16 %v20
  %v79 = vunpack.c.l.b16 %v21
  %v80 = vunpack.c.l.b16 %v22
  %v81 = vunpack.c.l.b16 %v23
  %v82 = vunpack.c.l.b16 %v24
  %v83 = vunpack.c.l.b16 %v25
  %v84 = vunpack.c.l.b16 %v26
  %v85 = vunpack.c.l.b16 %v27
  %v86 = vunpack.c.l.b16 %v28
  %v87 = vunpack.c.l.b16 %v29
  %v88 = vunpack.c.l.b16 %v30
  %v89 = vunpack.c.l.b16 %v31
  %v90 = vunpack.c.l.b16 %v32
  %v91 = vunpack.c.l.b16 %v33
  %v92 = vunpack.c.l.b16 %v34
  %v93 = vunpack.c.l.b16 %v35
  %v94 = vunpack.c.l.b16 %v36
  %v95 = vunpack.c.l.b16 %v37
  %v96 = vunpack.c.l.b16 %v38
  %v97 = vpack.c.b16 %v72, %v71
  %v98 = vpack.c.b16 %v74, %v73
  %v99 = vpack.c.b16 %v76, %v75
  %v100 = vpack.c.b16 %v78, %v77
  %v101 = vpack.c.b16 %v80, %v79
  %v102 = vpack.c.b16 %v82, %v81
  %v103 = vpack.c.b16 %v84, %v83
  %v104 = vpack.c.b16 %v86, %v85
  %v105 = vpack.c.b16 %v88, %v87
  %v106 = vpack.c.b16 %v90, %v89
  %v107 = vpack.c.b16 %v92, %v91
  %v108 = vpack.c.b16 %v94, %v93
  %v109 = vpack.c.b16 %v96, %v95
  %vm123 = vcmask 654336
  %v125 = vsel %vm123, %v43, 0
  %127 = vmatpush.bf16.msra.mxu0 %v104
  %128 = vmatpush.bf16.msra.mxu0 %v103
  %129 = vmatpush.bf16.msra.mxu0 %v102
  %130 = vmatpush.bf16.msra.mxu0 %v101
  %131 = vmatpush.bf16.msra.mxu0 %v100
  %132 = vmatpush.bf16.msra.mxu0 %v99
  %133 = vmatpush.bf16.msra.mxu0 %v98
  %134 = vmatpush.bf16.msra.mxu0 %v97
  %135 = vmatmul.bf16.gmra.mxu0 %v42
  %v136 = vpop.f32.mrf.mxu0
  %v137 = vadd.f32 0.0, %v136
  %v138 = vpop.f32.mrf.mxu0
  %139 = vdwg.mxu0
  %140 = vmatpush.bf16.msra.mxu0 0
  %141 = vmatpush.bf16.msra.mxu0 0
  %142 = vmatpush.bf16.msra.mxu0 0
  %143 = vmatpush.bf16.msra.mxu0 %v109
  %144 = vmatpush.bf16.msra.mxu0 %v108
  %145 = vmatpush.bf16.msra.mxu0 %v107
  %146 = vmatpush.bf16.msra.mxu0 %v106
  %147 = vmatpush.bf16.msra.mxu0 %v105
  %148 = vmatmul.bf16.gmra.mxu0 %v125
  %v149 = vpop.f32.mrf.mxu0
  %v150 = vadd.f32 %v137, %v149
  %v151 = vpop.f32.mrf.mxu0
  %152 = vdwg.mxu0
  %v153 = vmax.f32 %v150, 0.0
  %v154 = vpack.c.bf16 %v153, %v153
  %155 = vst [vmem:[%s2] sm:$0xf] %v154
  // Predicated region
  $region10: #{class_model_encoder_forward.7} parent=0 // pred_check
    _
  $region11: #{class_model_encoder_forward.7} parent=0 // pred_check_branch
    %157 = sbr.rel (0) target = $region13
  $region12: #{class_model_encoder_forward.7} parent=0 // pred_region
    _
  $region13: #{class_model_encoder_forward.7} parent=0 // pred_fallthru
    _
  // Predicated region
  $region14: #{class_model_encoder_forward.7} parent=0 // pred_check
    _
  $region15: #{class_model_encoder_forward.7} parent=0 // pred_check_branch
    %159 = sbr.rel (0) target = $region17
  $region16: #{class_model_encoder_forward.7} parent=0 // pred_region
    _
  $region17: #{class_model_encoder_forward.7} parent=0 // pred_fallthru
    _

// kernel: class_model_encoder_forward.9
$region0: #{class_model_encoder_forward.9}
  #allocation0 [shape = 'u32[]', space=smem, size = 0x4, offset = 0x4, fixed_abs, tag = 'smem constant byte address 0x4 - core index']
  #allocation1 [shape = 'u32[72,128]{1,0:T(1,128)}', space=vmem, size = 0x9000, scoped, tag = 'internal scratch']
  %s0 = inlined_call_operand.vmem [shape: bf16[16,128], index: 0, kind: input, shape index: {}]
  %s1 = inlined_call_operand.vmem [shape: bf16[128,128], index: 1, kind: input, shape index: {}]
  %s2 = inlined_call_operand.vmem [shape: bf16[16,128], index: 2, kind: output, shape index: {}]
  %s3 = sld [smem:[#allocation0]]
  $region18: #{class_model_encoder_forward.9} parent=0
    _
  %s5 = ssub.s32 1, %s3
  %s6 = scalar_select 0, %s5, %s3
  // Predicated region
  $region2: #{class_model_encoder_forward.9} parent=0 // pred_check
    _
  $region3: #{class_model_encoder_forward.9} parent=0 // pred_check_branch
    %8 = sbr.rel (0) target = $region5
  $region4: #{class_model_encoder_forward.9} parent=0 // pred_region
    _
  $region5: #{class_model_encoder_forward.9} parent=0 // pred_fallthru
    _
  // Predicated region
  $region6: #{class_model_encoder_forward.9} parent=0 // pred_check
    _
  $region7: #{class_model_encoder_forward.9} parent=0 // pred_check_branch
    %10 = sbr.rel (0) target = $region9
  $region8: #{class_model_encoder_forward.9} parent=0 // pred_region
    _
  $region9: #{class_model_encoder_forward.9} parent=0 // pred_fallthru
    _
  %v11 = vld [vmem:[%s0] sm:$0xf]
  %v12 = vld [vmem:[%s0 + $0x4] sm:$0xf]
  %v13 = vld [vmem:[%s1] sm:$0xf]
  %v14 = vld [vmem:[%s1 + $0x4] sm:$0xf]
  %v15 = vld [vmem:[%s1 + $0x8] sm:$0xf]
  %v16 = vld [vmem:[%s1 + $0xc] sm:$0xf]
  %v17 = vld [vmem:[%s1 + $0x10] sm:$0xf]
  %v18 = vld [vmem:[%s1 + $0x14] sm:$0xf]
  %v19 = vld [vmem:[%s1 + $0x18] sm:$0xf]
  %v20 = vld [vmem:[%s1 + $0x1c] sm:$0xf]
  %v21 = vld [vmem:[%s1 + $0x20] sm:$0xf]
  %v22 = vld [vmem:[%s1 + $0x24] sm:$0xf]
  %v23 = vld [vmem:[%s1 + $0x28] sm:$0xf]
  %v24 = vld [vmem:[%s1 + $0x2c] sm:$0xf]
  %v25 = vld [vmem:[%s1 + $0x30] sm:$0xf]
  %v26 = vld [vmem:[%s1 + $0x34] sm:$0xf]
  %v27 = vld [vmem:[%s1 + $0x38] sm:$0xf]
  %v28 = vld [vmem:[%s1 + $0x3c] sm:$0xf]
  %v31 = vunpack.c.l.b16 %v11
  %v32 = vunpack.c.l.b16 %v12
  %v33 = vpack.c.b16 %v32, %v31
  %v51 = vunpack.c.l.b16 %v13
  %v52 = vunpack.c.l.b16 %v14
  %v53 = vunpack.c.l.b16 %v15
  %v54 = vunpack.c.l.b16 %v16
  %v55 = vunpack.c.l.b16 %v17
  %v56 = vunpack.c.l.b16 %v18
  %v57 = vunpack.c.l.b16 %v19
  %v58 = vunpack.c.l.b16 %v20
  %v59 = vunpack.c.l.b16 %v21
  %v60 = vunpack.c.l.b16 %v22
  %v61 = vunpack.c.l.b16 %v23
  %v62 = vunpack.c.l.b16 %v24
  %v63 = vunpack.c.l.b16 %v25
  %v64 = vunpack.c.l.b16 %v26
  %v65 = vunpack.c.l.b16 %v27
  %v66 = vunpack.c.l.b16 %v28
  %v67 = vpack.c.b16 %v52, %v51
  %v68 = vpack.c.b16 %v54, %v53
  %v69 = vpack.c.b16 %v56, %v55
  %v70 = vpack.c.b16 %v58, %v57
  %v71 = vpack.c.b16 %v60, %v59
  %v72 = vpack.c.b16 %v62, %v61
  %v73 = vpack.c.b16 %v64, %v63
  %v74 = vpack.c.b16 %v66, %v65
  %83 = vmatpush.bf16.msra.mxu0 %v74
  %84 = vmatpush.bf16.msra.mxu0 %v73
  %85 = vmatpush.bf16.msra.mxu0 %v72
  %86 = vmatpush.bf16.msra.mxu0 %v71
  %87 = vmatpush.bf16.msra.mxu0 %v70
  %88 = vmatpush.bf16.msra.mxu0 %v69
  %89 = vmatpush.bf16.msra.mxu0 %v68
  %90 = vmatpush.bf16.msra.mxu0 %v67
  %91 = vmatmul.bf16.gmra.mxu0 %v33
  %v92 = vpop.f32.mrf.mxu0
  %v93 = vadd.f32 0.0, %v92
  %v94 = vpop.f32.mrf.mxu0
  %v95 = vadd.f32 0.0, %v94
  %96 = vdwg.mxu0
  %v97 = vmax.f32 %v93, 0.0
  %v98 = vmax.f32 %v95, 0.0
  %v99 = vpack.c.bf16 %v97, %v97
  %v100 = vpack.c.bf16 %v98, %v98
  %101 = vst [vmem:[%s2] sm:$0xf] %v99
  %102 = vst [vmem:[%s2 + $0x4] sm:$0xf] %v100
  // Predicated region
  $region10: #{class_model_encoder_forward.9} parent=0 // pred_check
    _
  $region11: #{class_model_encoder_forward.9} parent=0 // pred_check_branch
    %104 = sbr.rel (0) target = $region13
  $region12: #{class_model_encoder_forward.9} parent=0 // pred_region
    _
  $region13: #{class_model_encoder_forward.9} parent=0 // pred_fallthru
    _
  // Predicated region
  $region14: #{class_model_encoder_forward.9} parent=0 // pred_check
    _
  $region15: #{class_model_encoder_forward.9} parent=0 // pred_check_branch
    %106 = sbr.rel (0) target = $region17
  $region16: #{class_model_encoder_forward.9} parent=0 // pred_region
    _
  $region17: #{class_model_encoder_forward.9} parent=0 // pred_fallthru
    _

// kernel: class_model_encoder_forward.10
$region0: #{class_model_encoder_forward.10}
  #allocation0 [shape = 'u32[]', space=smem, size = 0x4, offset = 0x4, fixed_abs, tag = 'smem constant byte address 0x4 - core index']
  #allocation1 [shape = 'u32[72,128]{1,0:T(1,128)}', space=vmem, size = 0x9000, scoped, tag = 'internal scratch']
  %s0 = inlined_call_operand.vmem [shape: bf16[64,256], index: 0, kind: input, shape index: {}]
  %s1 = inlined_call_operand.vmem [shape: bf16[256,128], index: 1, kind: input, shape index: {}]
  %s2 = inlined_call_operand.vmem [shape: bf16[64,128], index: 2, kind: output, shape index: {}]
  %s3 = sld [smem:[#allocation0]]
  $region18: #{class_model_encoder_forward.10} parent=0
    _
  %s5 = ssub.s32 1, %s3
  %s6 = scalar_select 0, %s5, %s3
  // Predicated region
  $region2: #{class_model_encoder_forward.10} parent=0 // pred_check
    _
  $region3: #{class_model_encoder_forward.10} parent=0 // pred_check_branch
    %8 = sbr.rel (0) target = $region5
  $region4: #{class_model_encoder_forward.10} parent=0 // pred_region
    _
  $region5: #{class_model_encoder_forward.10} parent=0 // pred_fallthru
    _
  // Predicated region
  $region6: #{class_model_encoder_forward.10} parent=0 // pred_check
    _
  $region7: #{class_model_encoder_forward.10} parent=0 // pred_check_branch
    %10 = sbr.rel (0) target = $region9
  $region8: #{class_model_encoder_forward.10} parent=0 // pred_region
    _
  $region9: #{class_model_encoder_forward.10} parent=0 // pred_fallthru
    _
  %v11 = vld [vmem:[%s0] sm:$0xff]
  %v12 = vld [vmem:[%s0 + $0x8] sm:$0xff]
  %v13 = vld [vmem:[%s0 + $0x10] sm:$0xff]
  %v14 = vld [vmem:[%s0 + $0x18] sm:$0xff]
  %v15 = vld [vmem:[%s0 + $0x20] sm:$0xff]
  %v16 = vld [vmem:[%s0 + $0x28] sm:$0xff]
  %v17 = vld [vmem:[%s0 + $0x30] sm:$0xff]
  %v18 = vld [vmem:[%s0 + $0x38] sm:$0xff]
  %v19 = vld [vmem:[%s1] sm:$0xf]
  %v20 = vld [vmem:[%s1 + $0x4] sm:$0xf]
  %v21 = vld [vmem:[%s1 + $0x8] sm:$0xf]
  %v22 = vld [vmem:[%s1 + $0xc] sm:$0xf]
  %v23 = vld [vmem:[%s1 + $0x10] sm:$0xf]
  %v24 = vld [vmem:[%s1 + $0x14] sm:$0xf]
  %v25 = vld [vmem:[%s1 + $0x18] sm:$0xf]
  %v26 = vld [vmem:[%s1 + $0x1c] sm:$0xf]
  %v27 = vld [vmem:[%s1 + $0x20] sm:$0xf]
  %v28 = vld [vmem:[%s1 + $0x24] sm:$0xf]
  %v29 = vld [vmem:[%s1 + $0x28] sm:$0xf]
  %v30 = vld [vmem:[%s1 + $0x2c] sm:$0xf]
  %v31 = vld [vmem:[%s1 + $0x30] sm:$0xf]
  %v32 = vld [vmem:[%s1 + $0x34] sm:$0xf]
  %v33 = vld [vmem:[%s1 + $0x38] sm:$0xf]
  %v34 = vld [vmem:[%s1 + $0x3c] sm:$0xf]
  %v35 = vld [vmem:[%s1 + $0x40] sm:$0xf]
  %v36 = vld [vmem:[%s1 + $0x44] sm:$0xf]
  %v37 = vld [vmem:[%s1 + $0x48] sm:$0xf]
  %v38 = vld [vmem:[%s1 + $0x4c] sm:$0xf]
  %v39 = vld [vmem:[%s1 + $0x50] sm:$0xf]
  %v40 = vld [vmem:[%s1 + $0x54] sm:$0xf]
  %v41 = vld [vmem:[%s1 + $0x58] sm:$0xf]
  %v42 = vld [vmem:[%s1 + $0x5c] sm:$0xf]
  %v43 = vld [vmem:[%s1 + $0x60] sm:$0xf]
  %v44 = vld [vmem:[%s1 + $0x64] sm:$0xf]
  %v45 = vld [vmem:[%s1 + $0x68] sm:$0xf]
  %v46 = vld [vmem:[%s1 + $0x6c] sm:$0xf]
  %v47 = vld [vmem:[%s1 + $0x70] sm:$0xf]
  %v48 = vld [vmem:[%s1 + $0x74] sm:$0xf]
  %v49 = vld [vmem:[%s1 + $0x78] sm:$0xf]
  %v50 = vld [vmem:[%s1 + $0x7c] sm:$0xf]
  %v59 = vunpack.c.l.b16 %v11
  %v60 = vunpack.c.h.b16 %v11
  %v61 = vunpack.c.l.b16 %v12
  %v62 = vunpack.c.h.b16 %v12
  %v63 = vunpack.c.l.b16 %v13
  %v64 = vunpack.c.h.b16 %v13
  %v65 = vunpack.c.l.b16 %v14
  %v66 = vunpack.c.h.b16 %v14
  %v67 = vunpack.c.l.b16 %v15
  %v68 = vunpack.c.h.b16 %v15
  %v69 = vunpack.c.l.b16 %v16
  %v70 = vunpack.c.h.b16 %v16
  %v71 = vunpack.c.l.b16 %v17
  %v72 = vunpack.c.h.b16 %v17
  %v73 = vunpack.c.l.b16 %v18
  %v74 = vunpack.c.h.b16 %v18
  %v75 = vpack.c.b16 %v61, %v59
  %v76 = vpack.c.b16 %v62, %v60
  %v77 = vpack.c.b16 %v65, %v63
  %v78 = vpack.c.b16 %v66, %v64
  %v79 = vpack.c.b16 %v69, %v67
  %v80 = vpack.c.b16 %v70, %v68
  %v81 = vpack.c.b16 %v73, %v71
  %v82 = vpack.c.b16 %v74, %v72
  %v123 = vunpack.c.l.b16 %v19
  %v124 = vunpack.c.l.b16 %v20
  %v125 = vunpack.c.l.b16 %v21
  %v126 = vunpack.c.l.b16 %v22
  %v127 = vunpack.c.l.b16 %v23
  %v128 = vunpack.c.l.b16 %v24
  %v129 = vunpack.c.l.b16 %v25
  %v130 = vunpack.c.l.b16 %v26
  %v131 = vunpack.c.l.b16 %v27
  %v132 = vunpack.c.l.b16 %v28
  %v133 = vunpack.c.l.b16 %v29
  %v134 = vunpack.c.l.b16 %v30
  %v135 = vunpack.c.l.b16 %v31
  %v136 = vunpack.c.l.b16 %v32
  %v137 = vunpack.c.l.b16 %v33
  %v138 = vunpack.c.l.b16 %v34
  %v139 = vunpack.c.l.b16 %v35
  %v140 = vunpack.c.l.b16 %v36
  %v141 = vunpack.c.l.b16 %v37
  %v142 = vunpack.c.l.b16 %v38
  %v143 = vunpack.c.l.b16 %v39
  %v144 = vunpack.c.l.b16 %v40
  %v145 = vunpack.c.l.b16 %v41
  %v146 = vunpack.c.l.b16 %v42
  %v147 = vunpack.c.l.b16 %v43
  %v148 = vunpack.c.l.b16 %v44
  %v149 = vunpack.c.l.b16 %v45
  %v150 = vunpack.c.l.b16 %v46
  %v151 = vunpack.c.l.b16 %v47
  %v152 = vunpack.c.l.b16 %v48
  %v153 = vunpack.c.l.b16 %v49
  %v154 = vunpack.c.l.b16 %v50
  %v155 = vpack.c.b16 %v124, %v123
  %v156 = vpack.c.b16 %v126, %v125
  %v157 = vpack.c.b16 %v128, %v127
  %v158 = vpack.c.b16 %v130, %v129
  %v159 = vpack.c.b16 %v132, %v131
  %v160 = vpack.c.b16 %v134, %v133
  %v161 = vpack.c.b16 %v136, %v135
  %v162 = vpack.c.b16 %v138, %v137
  %v163 = vpack.c.b16 %v140, %v139
  %v164 = vpack.c.b16 %v142, %v141
  %v165 = vpack.c.b16 %v144, %v143
  %v166 = vpack.c.b16 %v146, %v145
  %v167 = vpack.c.b16 %v148, %v147
  %v168 = vpack.c.b16 %v150, %v149
  %v169 = vpack.c.b16 %v152, %v151
  %v170 = vpack.c.b16 %v154, %v153
  %187 = vmatpush.bf16.msra.mxu0 %v162
  %188 = vmatpush.bf16.msra.mxu0 %v161
  %189 = vmatpush.bf16.msra.mxu0 %v160
  %190 = vmatpush.bf16.msra.mxu0 %v159
  %191 = vmatpush.bf16.msra.mxu0 %v158
  %192 = vmatpush.bf16.msra.mxu0 %v157
  %193 = vmatpush.bf16.msra.mxu0 %v156
  %194 = vmatpush.bf16.msra.mxu0 %v155
  %195 = vmatmul.bf16.gmra.mxu0 %v75
  %v196 = vpop.f32.mrf.mxu0
  %v197 = vadd.f32 0.0, %v196
  %v198 = vpop.f32.mrf.mxu0
  %v199 = vadd.f32 0.0, %v198
  %200 = vmatmul.bf16.gmra.mxu0 %v77
  %v201 = vpop.f32.mrf.mxu0
  %v202 = vadd.f32 0.0, %v201
  %v203 = vpop.f32.mrf.mxu0
  %v204 = vadd.f32 0.0, %v203
  %205 = vmatmul.bf16.gmra.mxu0 %v79
  %v206 = vpop.f32.mrf.mxu0
  %v207 = vadd.f32 0.0, %v206
  %v208 = vpop.f32.mrf.mxu0
  %v209 = vadd.f32 0.0, %v208
  %210 = vmatmul.bf16.gmra.mxu0 %v81
  %v211 = vpop.f32.mrf.mxu0
  %v212 = vadd.f32 0.0, %v211
  %v213 = vpop.f32.mrf.mxu0
  %v214 = vadd.f32 0.0, %v213
  %215 = vdwg.mxu0
  %216 = vmatpush.bf16.msra.mxu0 %v170
  %217 = vmatpush.bf16.msra.mxu0 %v169
  %218 = vmatpush.bf16.msra.mxu0 %v168
  %219 = vmatpush.bf16.msra.mxu0 %v167
  %220 = vmatpush.bf16.msra.mxu0 %v166
  %221 = vmatpush.bf16.msra.mxu0 %v165
  %222 = vmatpush.bf16.msra.mxu0 %v164
  %223 = vmatpush.bf16.msra.mxu0 %v163
  %224 = vmatmul.bf16.gmra.mxu0 %v76
  %v225 = vpop.f32.mrf.mxu0
  %v226 = vadd.f32 %v197, %v225
  %v227 = vpop.f32.mrf.mxu0
  %v228 = vadd.f32 %v199, %v227
  %229 = vmatmul.bf16.gmra.mxu0 %v78
  %v230 = vpop.f32.mrf.mxu0
  %v231 = vadd.f32 %v202, %v230
  %v232 = vpop.f32.mrf.mxu0
  %v233 = vadd.f32 %v204, %v232
  %234 = vmatmul.bf16.gmra.mxu0 %v80
  %v235 = vpop.f32.mrf.mxu0
  %v236 = vadd.f32 %v207, %v235
  %v237 = vpop.f32.mrf.mxu0
  %v238 = vadd.f32 %v209, %v237
  %239 = vmatmul.bf16.gmra.mxu0 %v82
  %v240 = vpop.f32.mrf.mxu0
  %v241 = vadd.f32 %v212, %v240
  %v242 = vpop.f32.mrf.mxu0
  %v243 = vadd.f32 %v214, %v242
  %244 = vdwg.mxu0
  %v245 = vpack.c.bf16 %v226, %v226
  %v246 = vpack.c.bf16 %v228, %v228
  %v247 = vpack.c.bf16 %v231, %v231
  %v248 = vpack.c.bf16 %v233, %v233
  %v249 = vpack.c.bf16 %v236, %v236
  %v250 = vpack.c.bf16 %v238, %v238
  %v251 = vpack.c.bf16 %v241, %v241
  %v252 = vpack.c.bf16 %v243, %v243
  %253 = vst [vmem:[%s2] sm:$0xf] %v245
  %254 = vst [vmem:[%s2 + $0x4] sm:$0xf] %v246
  %255 = vst [vmem:[%s2 + $0x8] sm:$0xf] %v247
  %256 = vst [vmem:[%s2 + $0xc] sm:$0xf] %v248
  %257 = vst [vmem:[%s2 + $0x10] sm:$0xf] %v249
  %258 = vst [vmem:[%s2 + $0x14] sm:$0xf] %v250
  %259 = vst [vmem:[%s2 + $0x18] sm:$0xf] %v251
  %260 = vst [vmem:[%s2 + $0x1c] sm:$0xf] %v252
  // Predicated region
  $region10: #{class_model_encoder_forward.10} parent=0 // pred_check
    _
  $region11: #{class_model_encoder_forward.10} parent=0 // pred_check_branch
    %262 = sbr.rel (0) target = $region13
  $region12: #{class_model_encoder_forward.10} parent=0 // pred_region
    _
  $region13: #{class_model_encoder_forward.10} parent=0 // pred_fallthru
    _
  // Predicated region
  $region14: #{class_model_encoder_forward.10} parent=0 // pred_check
    _
  $region15: #{class_model_encoder_forward.10} parent=0 // pred_check_branch
    %264 = sbr.rel (0) target = $region17
  $region16: #{class_model_encoder_forward.10} parent=0 // pred_region
    _
  $region17: #{class_model_encoder_forward.10} parent=0 // pred_fallthru
    _

// kernel: class_model_encoder_forward.6
$region0: #{class_model_encoder_forward.6}
  #allocation0 [shape = 'u32[]', space=smem, size = 0x4, offset = 0x4, fixed_abs, tag = 'smem constant byte address 0x4 - core index']
  #allocation1 [shape = 'u32[72,128]{1,0:T(1,128)}', space=vmem, size = 0x9000, scoped, tag = 'internal scratch']
  %s0 = inlined_call_operand.vmem [shape: bf16[8,208], index: 0, kind: input, shape index: {}]
  %s1 = inlined_call_operand.vmem [shape: bf16[208,512], index: 1, kind: input, shape index: {}]
  %s2 = inlined_call_operand.vmem [shape: bf16[8,512], index: 2, kind: output, shape index: {}]
  %s3 = sld [smem:[#allocation0]]
  $region18: #{class_model_encoder_forward.6} parent=0
    _
  %s5 = ssub.s32 1, %s3
  %s6 = scalar_select 0, %s5, %s3
  // Predicated region
  $region2: #{class_model_encoder_forward.6} parent=0 // pred_check
    _
  $region3: #{class_model_encoder_forward.6} parent=0 // pred_check_branch
    %8 = sbr.rel (0) target = $region5
  $region4: #{class_model_encoder_forward.6} parent=0 // pred_region
    _
  $region5: #{class_model_encoder_forward.6} parent=0 // pred_fallthru
    _
  // Predicated region
  $region6: #{class_model_encoder_forward.6} parent=0 // pred_check
    _
  $region7: #{class_model_encoder_forward.6} parent=0 // pred_check_branch
    %10 = sbr.rel (0) target = $region9
  $region8: #{class_model_encoder_forward.6} parent=0 // pred_region
    _
  $region9: #{class_model_encoder_forward.6} parent=0 // pred_fallthru
    _
  %v12 = vld [vmem:[%s0] sm:$0xff]
  %v13 = vld [vmem:[%s1] sm:$0xff]
  %v14 = vld [vmem:[%s1 + $0x8] sm:$0xff]
  %v15 = vld [vmem:[%s1 + $0x10] sm:$0xff]
  %v16 = vld [vmem:[%s1 + $0x18] sm:$0xff]
  %v17 = vld [vmem:[%s1 + $0x20] sm:$0xff]
  %v18 = vld [vmem:[%s1 + $0x28] sm:$0xff]
  %v19 = vld [vmem:[%s1 + $0x30] sm:$0xff]
  %v20 = vld [vmem:[%s1 + $0x38] sm:$0xff]
  %v21 = vld [vmem:[%s1 + $0x40] sm:$0xff]
  %v22 = vld [vmem:[%s1 + $0x48] sm:$0xff]
  %v23 = vld [vmem:[%s1 + $0x50] sm:$0xff]
  %v24 = vld [vmem:[%s1 + $0x58] sm:$0xff]
  %v25 = vld [vmem:[%s1 + $0x60] sm:$0xff]
  %v26 = vld [vmem:[%s1 + $0x68] sm:$0xff]
  %v27 = vld [vmem:[%s1 + $0x70] sm:$0xff]
  %v28 = vld [vmem:[%s1 + $0x78] sm:$0xff]
  %v29 = vld [vmem:[%s1 + $0x80] sm:$0xff]
  %v30 = vld [vmem:[%s1 + $0x88] sm:$0xff]
  %v31 = vld [vmem:[%s1 + $0x90] sm:$0xff]
  %v32 = vld [vmem:[%s1 + $0x98] sm:$0xff]
  %v33 = vld [vmem:[%s1 + $0xa0] sm:$0xff]
  %v34 = vld [vmem:[%s1 + $0xa8] sm:$0xff]
  %v35 = vld [vmem:[%s1 + $0xb0] sm:$0xff]
  %v36 = vld [vmem:[%s1 + $0xb8] sm:$0xff]
  %v37 = vld [vmem:[%s1 + $0xc0] sm:$0xff]
  %v38 = vld [vmem:[%s1 + $0xc8] sm:$0xff]
  %v39 = vld [vmem:[%s1 + $0xd0] sm:$0xff]
  %v40 = vld [vmem:[%s1 + $0xd8] sm:$0xff]
  %v41 = vld [vmem:[%s1 + $0xe0] sm:$0xff]
  %v42 = vld [vmem:[%s1 + $0xe8] sm:$0xff]
  %v43 = vld [vmem:[%s1 + $0xf0] sm:$0xff]
  %v44 = vld [vmem:[%s1 + $0xf8] sm:$0xff]
  %v45 = vld [vmem:[%s1 + $0x100] sm:$0xff]
  %v46 = vld [vmem:[%s1 + $0x108] sm:$0xff]
  %v47 = vld [vmem:[%s1 + $0x110] sm:$0xff]
  %v48 = vld [vmem:[%s1 + $0x118] sm:$0xff]
  %v49 = vld [vmem:[%s1 + $0x120] sm:$0xff]
  %v50 = vld [vmem:[%s1 + $0x128] sm:$0xff]
  %v51 = vld [vmem:[%s1 + $0x130] sm:$0xff]
  %v52 = vld [vmem:[%s1 + $0x138] sm:$0xff]
  %v53 = vld [vmem:[%s1 + $0x140] sm:$0xff]
  %v54 = vld [vmem:[%s1 + $0x148] sm:$0xff]
  %v55 = vld [vmem:[%s1 + $0x150] sm:$0xff]
  %v56 = vld [vmem:[%s1 + $0x158] sm:$0xff]
  %v57 = vld [vmem:[%s1 + $0x160] sm:$0xff]
  %v58 = vld [vmem:[%s1 + $0x168] sm:$0xff]
  %v59 = vld [vmem:[%s1 + $0x170] sm:$0xff]
  %v60 = vld [vmem:[%s1 + $0x178] sm:$0xff]
  %v61 = vld [vmem:[%s1 + $0x180] sm:$0xff]
  %v62 = vld [vmem:[%s1 + $0x188] sm:$0xff]
  %v63 = vld [vmem:[%s1 + $0x190] sm:$0xff]
  %v64 = vld [vmem:[%s1 + $0x198] sm:$0xff]
  %v66 = vunpack.c.l.b16 %v12
  %v67 = vunpack.c.h.b16 %v12
  %v68 = vpack.c.b16 %v66, %v66
  %v69 = vpack.c.b16 %v67, %v67
  %v123 = vunpack.c.l.b16 %v13
  %v124 = vunpack.c.h.b16 %v13
  %v125 = vunpack.c.l.b16 %v14
  %v126 = vunpack.c.h.b16 %v14
  %v127 = vunpack.c.l.b16 %v15
  %v128 = vunpack.c.h.b16 %v15
  %v129 = vunpack.c.l.b16 %v16
  %v130 = vunpack.c.h.b16 %v16
  %v131 = vunpack.c.l.b16 %v17
  %v132 = vunpack.c.h.b16 %v17
  %v133 = vunpack.c.l.b16 %v18
  %v134 = vunpack.c.h.b16 %v18
  %v135 = vunpack.c.l.b16 %v19
  %v136 = vunpack.c.h.b16 %v19
  %v137 = vunpack.c.l.b16 %v20
  %v138 = vunpack.c.h.b16 %v20
  %v139 = vunpack.c.l.b16 %v21
  %v140 = vunpack.c.h.b16 %v21
  %v141 = vunpack.c.l.b16 %v22
  %v142 = vunpack.c.h.b16 %v22
  %v143 = vunpack.c.l.b16 %v23
  %v144 = vunpack.c.h.b16 %v23
  %v145 = vunpack.c.l.b16 %v24
  %v146 = vunpack.c.h.b16 %v24
  %v147 = vunpack.c.l.b16 %v25
  %v148 = vunpack.c.h.b16 %v25
  %v149 = vunpack.c.l.b16 %v26
  %v150 = vunpack.c.h.b16 %v26
  %v151 = vunpack.c.l.b16 %v27
  %v152 = vunpack.c.h.b16 %v27
  %v153 = vunpack.c.l.b16 %v28
  %v154 = vunpack.c.h.b16 %v28
  %v155 = vunpack.c.l.b16 %v29
  %v156 = vunpack.c.h.b16 %v29
  %v157 = vunpack.c.l.b16 %v30
  %v158 = vunpack.c.h.b16 %v30
  %v159 = vunpack.c.l.b16 %v31
  %v160 = vunpack.c.h.b16 %v31
  %v161 = vunpack.c.l.b16 %v32
  %v162 = vunpack.c.h.b16 %v32
  %v163 = vunpack.c.l.b16 %v33
  %v164 = vunpack.c.h.b16 %v33
  %v165 = vunpack.c.l.b16 %v34
  %v166 = vunpack.c.h.b16 %v34
  %v167 = vunpack.c.l.b16 %v35
  %v168 = vunpack.c.h.b16 %v35
  %v169 = vunpack.c.l.b16 %v36
  %v170 = vunpack.c.h.b16 %v36
  %v171 = vunpack.c.l.b16 %v37
  %v172 = vunpack.c.h.b16 %v37
  %v173 = vunpack.c.l.b16 %v38
  %v174 = vunpack.c.h.b16 %v38
  %v175 = vunpack.c.l.b16 %v39
  %v176 = vunpack.c.h.b16 %v39
  %v177 = vunpack.c.l.b16 %v40
  %v178 = vunpack.c.h.b16 %v40
  %v179 = vunpack.c.l.b16 %v41
  %v180 = vunpack.c.h.b16 %v41
  %v181 = vunpack.c.l.b16 %v42
  %v182 = vunpack.c.h.b16 %v42
  %v183 = vunpack.c.l.b16 %v43
  %v184 = vunpack.c.h.b16 %v43
  %v185 = vunpack.c.l.b16 %v44
  %v186 = vunpack.c.h.b16 %v44
  %v187 = vunpack.c.l.b16 %v45
  %v188 = vunpack.c.h.b16 %v45
  %v189 = vunpack.c.l.b16 %v46
  %v190 = vunpack.c.h.b16 %v46
  %v191 = vunpack.c.l.b16 %v47
  %v192 = vunpack.c.h.b16 %v47
  %v193 = vunpack.c.l.b16 %v48
  %v194 = vunpack.c.h.b16 %v48
  %v195 = vunpack.c.l.b16 %v49
  %v196 = vunpack.c.h.b16 %v49
  %v197 = vunpack.c.l.b16 %v50
  %v198 = vunpack.c.h.b16 %v50
  %v199 = vunpack.c.l.b16 %v51
  %v200 = vunpack.c.h.b16 %v51
  %v201 = vunpack.c.l.b16 %v52
  %v202 = vunpack.c.h.b16 %v52
  %v203 = vunpack.c.l.b16 %v53
  %v204 = vunpack.c.h.b16 %v53
  %v205 = vunpack.c.l.b16 %v54
  %v206 = vunpack.c.h.b16 %v54
  %v207 = vunpack.c.l.b16 %v55
  %v208 = vunpack.c.h.b16 %v55
  %v209 = vunpack.c.l.b16 %v56
  %v210 = vunpack.c.h.b16 %v56
  %v211 = vunpack.c.l.b16 %v57
  %v212 = vunpack.c.h.b16 %v57
  %v213 = vunpack.c.l.b16 %v58
  %v214 = vunpack.c.h.b16 %v58
  %v215 = vunpack.c.l.b16 %v59
  %v216 = vunpack.c.h.b16 %v59
  %v217 = vunpack.c.l.b16 %v60
  %v218 = vunpack.c.h.b16 %v60
  %v219 = vunpack.c.l.b16 %v61
  %v220 = vunpack.c.h.b16 %v61
  %v221 = vunpack.c.l.b16 %v62
  %v222 = vunpack.c.h.b16 %v62
  %v223 = vunpack.c.l.b16 %v63
  %v224 = vunpack.c.h.b16 %v63
  %v225 = vunpack.c.l.b16 %v64
  %v226 = vunpack.c.h.b16 %v64
  %v227 = vpack.c.b16 %v127, %v123
  %v228 = vpack.c.b16 %v128, %v124
  %v229 = vpack.c.b16 %v129, %v125
  %v230 = vpack.c.b16 %v130, %v126
  %v231 = vpack.c.b16 %v135, %v131
  %v232 = vpack.c.b16 %v136, %v132
  %v233 = vpack.c.b16 %v137, %v133
  %v234 = vpack.c.b16 %v138, %v134
  %v235 = vpack.c.b16 %v143, %v139
  %v236 = vpack.c.b16 %v144, %v140
  %v237 = vpack.c.b16 %v145, %v141
  %v238 = vpack.c.b16 %v146, %v142
  %v239 = vpack.c.b16 %v151, %v147
  %v240 = vpack.c.b16 %v152, %v148
  %v241 = vpack.c.b16 %v153, %v149
  %v242 = vpack.c.b16 %v154, %v150
  %v243 = vpack.c.b16 %v159, %v155
  %v244 = vpack.c.b16 %v160, %v156
  %v245 = vpack.c.b16 %v161, %v157
  %v246 = vpack.c.b16 %v162, %v158
  %v247 = vpack.c.b16 %v167, %v163
  %v248 = vpack.c.b16 %v168, %v164
  %v249 = vpack.c.b16 %v169, %v165
  %v250 = vpack.c.b16 %v170, %v166
  %v251 = vpack.c.b16 %v175, %v171
  %v252 = vpack.c.b16 %v176, %v172
  %v253 = vpack.c.b16 %v177, %v173
  %v254 = vpack.c.b16 %v178, %v174
  %v255 = vpack.c.b16 %v183, %v179
  %v256 = vpack.c.b16 %v184, %v180
  %v257 = vpack.c.b16 %v185, %v181
  %v258 = vpack.c.b16 %v186, %v182
  %v259 = vpack.c.b16 %v191, %v187
  %v260 = vpack.c.b16 %v192, %v188
  %v261 = vpack.c.b16 %v193, %v189
  %v262 = vpack.c.b16 %v194, %v190
  %v263 = vpack.c.b16 %v199, %v195
  %v264 = vpack.c.b16 %v200, %v196
  %v265 = vpack.c.b16 %v201, %v197
  %v266 = vpack.c.b16 %v202, %v198
  %v267 = vpack.c.b16 %v207, %v203
  %v268 = vpack.c.b16 %v208, %v204
  %v269 = vpack.c.b16 %v209, %v205
  %v270 = vpack.c.b16 %v210, %v206
  %v271 = vpack.c.b16 %v215, %v211
  %v272 = vpack.c.b16 %v216, %v212
  %v273 = vpack.c.b16 %v217, %v213
  %v274 = vpack.c.b16 %v218, %v214
  %v275 = vpack.c.b16 %v223, %v219
  %v276 = vpack.c.b16 %v224, %v220
  %v277 = vpack.c.b16 %v225, %v221
  %v278 = vpack.c.b16 %v226, %v222
  %vm331 = vcmask 654336
  %v333 = vsel %vm331, %v69, 0
  %335 = vmatpush.bf16.msra.mxu0 %v255
  %336 = vmatpush.bf16.msra.mxu0 %v251
  %337 = vmatpush.bf16.msra.mxu0 %v247
  %338 = vmatpush.bf16.msra.mxu0 %v243
  %339 = vmatpush.bf16.msra.mxu0 %v239
  %340 = vmatpush.bf16.msra.mxu0 %v235
  %341 = vmatpush.bf16.msra.mxu0 %v231
  %342 = vmatpush.bf16.msra.mxu0 %v227
  %343 = vmatmul.bf16.gmra.mxu0 %v68
  %v344 = vpop.f32.mrf.mxu0
  %v345 = vadd.f32 0.0, %v344
  %v346 = vpop.f32.mrf.mxu0
  %347 = vdwg.mxu0
  %348 = vmatpush.bf16.msra.mxu0 0
  %349 = vmatpush.bf16.msra.mxu0 0
  %350 = vmatpush.bf16.msra.mxu0 0
  %351 = vmatpush.bf16.msra.mxu0 %v275
  %352 = vmatpush.bf16.msra.mxu0 %v271
  %353 = vmatpush.bf16.msra.mxu0 %v267
  %354 = vmatpush.bf16.msra.mxu0 %v263
  %355 = vmatpush.bf16.msra.mxu0 %v259
  %356 = vmatmul.bf16.gmra.mxu0 %v333
  %v357 = vpop.f32.mrf.mxu0
  %v358 = vadd.f32 %v345, %v357
  %v359 = vpop.f32.mrf.mxu0
  %360 = vdwg.mxu0
  %361 = vmatpush.bf16.msra.mxu0 %v256
  %362 = vmatpush.bf16.msra.mxu0 %v252
  %363 = vmatpush.bf16.msra.mxu0 %v248
  %364 = vmatpush.bf16.msra.mxu0 %v244
  %365 = vmatpush.bf16.msra.mxu0 %v240
  %366 = vmatpush.bf16.msra.mxu0 %v236
  %367 = vmatpush.bf16.msra.mxu0 %v232
  %368 = vmatpush.bf16.msra.mxu0 %v228
  %369 = vmatmul.bf16.gmra.mxu0 %v68
  %v370 = vpop.f32.mrf.mxu0
  %v371 = vadd.f32 0.0, %v370
  %v372 = vpop.f32.mrf.mxu0
  %373 = vdwg.mxu0
  %374 = vmatpush.bf16.msra.mxu0 0
  %375 = vmatpush.bf16.msra.mxu0 0
  %376 = vmatpush.bf16.msra.mxu0 0
  %377 = vmatpush.bf16.msra.mxu0 %v276
  %378 = vmatpush.bf16.msra.mxu0 %v272
  %379 = vmatpush.bf16.msra.mxu0 %v268
  %380 = vmatpush.bf16.msra.mxu0 %v264
  %381 = vmatpush.bf16.msra.mxu0 %v260
  %382 = vmatmul.bf16.gmra.mxu0 %v333
  %v383 = vpop.f32.mrf.mxu0
  %v384 = vadd.f32 %v371, %v383
  %v385 = vpop.f32.mrf.mxu0
  %386 = vdwg.mxu0
  %387 = vmatpush.bf16.msra.mxu0 %v257
  %388 = vmatpush.bf16.msra.mxu0 %v253
  %389 = vmatpush.bf16.msra.mxu0 %v249
  %390 = vmatpush.bf16.msra.mxu0 %v245
  %391 = vmatpush.bf16.msra.mxu0 %v241
  %392 = vmatpush.bf16.msra.mxu0 %v237
  %393 = vmatpush.bf16.msra.mxu0 %v233
  %394 = vmatpush.bf16.msra.mxu0 %v229
  %395 = vmatmul.bf16.gmra.mxu0 %v68
  %v396 = vpop.f32.mrf.mxu0
  %v397 = vadd.f32 0.0, %v396
  %v398 = vpop.f32.mrf.mxu0
  %399 = vdwg.mxu0
  %400 = vmatpush.bf16.msra.mxu0 0
  %401 = vmatpush.bf16.msra.mxu0 0
  %402 = vmatpush.bf16.msra.mxu0 0
  %403 = vmatpush.bf16.msra.mxu0 %v277
  %404 = vmatpush.bf16.msra.mxu0 %v273
  %405 = vmatpush.bf16.msra.mxu0 %v269
  %406 = vmatpush.bf16.msra.mxu0 %v265
  %407 = vmatpush.bf16.msra.mxu0 %v261
  %408 = vmatmul.bf16.gmra.mxu0 %v333
  %v409 = vpop.f32.mrf.mxu0
  %v410 = vadd.f32 %v397, %v409
  %v411 = vpop.f32.mrf.mxu0
  %412 = vdwg.mxu0
  %413 = vmatpush.bf16.msra.mxu0 %v258
  %414 = vmatpush.bf16.msra.mxu0 %v254
  %415 = vmatpush.bf16.msra.mxu0 %v250
  %416 = vmatpush.bf16.msra.mxu0 %v246
  %417 = vmatpush.bf16.msra.mxu0 %v242
  %418 = vmatpush.bf16.msra.mxu0 %v238
  %419 = vmatpush.bf16.msra.mxu0 %v234
  %420 = vmatpush.bf16.msra.mxu0 %v230
  %421 = vmatmul.bf16.gmra.mxu0 %v68
  %v422 = vpop.f32.mrf.mxu0
  %v423 = vadd.f32 0.0, %v422
  %v424 = vpop.f32.mrf.mxu0
  %425 = vdwg.mxu0
  %426 = vmatpush.bf16.msra.mxu0 0
  %427 = vmatpush.bf16.msra.mxu0 0
  %428 = vmatpush.bf16.msra.mxu0 0
  %429 = vmatpush.bf16.msra.mxu0 %v278
  %430 = vmatpush.bf16.msra.mxu0 %v274
  %431 = vmatpush.bf16.msra.mxu0 %v270
  %432 = vmatpush.bf16.msra.mxu0 %v266
  %433 = vmatpush.bf16.msra.mxu0 %v262
  %434 = vmatmul.bf16.gmra.mxu0 %v333
  %v435 = vpop.f32.mrf.mxu0
  %v436 = vadd.f32 %v423, %v435
  %v437 = vpop.f32.mrf.mxu0
  %438 = vdwg.mxu0
  %v439 = vmax.f32 %v358, 0.0
  %v440 = vmax.f32 %v384, 0.0
  %v441 = vmax.f32 %v410, 0.0
  %v442 = vmax.f32 %v436, 0.0
  %v443 = vpack.c.bf16 %v440, %v439
  %v444 = vpack.c.bf16 %v442, %v441
  %445 = vst [vmem:[%s2] sm:$0xff] %v443
  %446 = vst [vmem:[%s2 + $0x8] sm:$0xff] %v444
  // Predicated region
  $region10: #{class_model_encoder_forward.6} parent=0 // pred_check
    _
  $region11: #{class_model_encoder_forward.6} parent=0 // pred_check_branch
    %448 = sbr.rel (0) target = $region13
  $region12: #{class_model_encoder_forward.6} parent=0 // pred_region
    _
  $region13: #{class_model_encoder_forward.6} parent=0 // pred_fallthru
    _
  // Predicated region
  $region14: #{class_model_encoder_forward.6} parent=0 // pred_check
    _
  $region15: #{class_model_encoder_forward.6} parent=0 // pred_check_branch
    %450 = sbr.rel (0) target = $region17
  $region16: #{class_model_encoder_forward.6} parent=0 // pred_region
    _
  $region17: #{class_model_encoder_forward.6} parent=0 // pred_fallthru
    _

// kernel: class_model_encoder_forward.11
$region0: #{class_model_encoder_forward.11}
  #allocation0 [shape = 'u32[]', space=smem, size = 0x4, offset = 0x4, fixed_abs, tag = 'smem constant byte address 0x4 - core index']
  #allocation1 [shape = 'u32[72,128]{1,0:T(1,128)}', space=vmem, size = 0x9000, scoped, tag = 'internal scratch']
  #allocation2 [shape = 'f32[64,2]{1,0:T(8,128)}', space=vmem, size = 0x8000, scoped, tag = 'scratch operand']
  %s0 = inlined_call_operand.vmem [shape: bf16[64,256], index: 0, kind: input, shape index: {}]
  %s1 = inlined_call_operand.vmem [shape: bf16[256,256], index: 1, kind: input, shape index: {}]
  %s2 = inlined_call_operand.vmem [shape: bf16[64,256], index: 2, kind: input, shape index: {}]
  %s3 = inlined_call_operand.vmem [shape: f32[64,64], index: 3, kind: input, shape index: {}]
  %s4 = inlined_call_operand.vmem [shape: f32[64,1], index: 4, kind: input, shape index: {}]
  %s5 = inlined_call_operand.vmem [shape: f32[64,2], index: 5, kind: output, shape index: {}]
  %s6 = sld [smem:[#allocation0]]
  $region143: #{class_model_encoder_forward.11} parent=0
    _
  %s8 = ssub.s32 1, %s6
  %s9 = scalar_select 0, %s8, %s6
  $region1: #{class_model_encoder_forward.11} parent=0
    #allocation3 [shape = 'u8[131072]{0}', space=vmem, size = 0x20000, scoped, tag = 'input window, operand 1']
    #allocation4 [shape = 'u8[32768]{0}', space=vmem, size = 0x8000, scoped, tag = 'input window, operand 2']
    loop: start=0, step=1, limit=4
    $region2: #{class_model_encoder_forward.11} parent=1 // loop_pre_header
      _
    $region3: #{class_model_encoder_forward.11} parent=1 // loop_header
      %s11 = sphi 0, %s15
      %p12 = scmp.ge.s32.totalorder %s11, 4
      %s18 = sphi 0, %s30
      %s19 = sphi 0, %s26
      %s20 = sphi 0, %s18
      %s21 = sphi 0, %s19
      %s22 = sphi 0, %s20
      %s23 = sphi 0, %s21
      %s31 = sphi 0, %s31
      %s33 = sphi 0, %s31
      %s34 = sphi 0, %s33
      %s48 = sphi 0, %s34
      %s56 = sphi 0, %s58
      %s59 = sphi 0, %s56
      %s60 = sphi 0, %s59
      %s76 = sphi 0, %s60
      %s84 = sphi 0, %s86
      %s87 = sphi 0, %s84
      %s88 = sphi 0, %s87
      %s104 = sphi 0, %s88
      %s108 = sphi 0, %s108
      %s110 = sphi 0, %s108
      %s111 = sphi 0, %s110
      %s125 = sphi 0, %s111
      %s129 = sphi 0, %s129
      %s131 = sphi 0, %s129
      %s132 = sphi 0, %s131
      %s146 = sphi 0, %s132
      %s150 = sphi 0, %s150
      %s152 = sphi 0, %s150
      %s153 = sphi 0, %s152
      %s167 = sphi 0, %s153
    $region4: #{class_model_encoder_forward.11} parent=1 // loop_header_branch
      %14 = sbr.rel (%p12) target = $region8
    $region5: #{class_model_encoder_forward.11} parent=1 // loop_body
      %s16 = ssub.s32 %s11, 1
      %s17 = ssub.s32 %s11, 2
      %s24 = sadd.s32 1, %s19
      %p25 = scmp.ge.s32.totalorder %s24, 1
      %s26 = scalar_select %p25, 0, %s24
      %s27 = sadd.s32 1, %s18
      %s28 = scalar_select %p25, %s27, %s18
      %p29 = scmp.ge.s32.totalorder %s28, 2
      %s30 = scalar_select %p29, 0, %s28
      %s32 = sadd.s32 %s31, 1
      %p35 = scmp.eq.s32.totalorder %s11, 1
      %p36 = scmp.ne.s32.totalorder %s31, %s33
      %p37 = scmp.eq.s32.totalorder %s11, 0
      %p38 = por %p36, %p37
      %p39 = scmp.ne.s32.totalorder %s31, %s33
      %p40 = scmp.eq.s32.totalorder %s16, 1
      %p41 = por %p39, %p40
      %p42 = scmp.ne.s32.totalorder %s33, %s34
      %p43 = scmp.eq.s32.totalorder %s16, 0
      %p44 = por %p42, %p43
      %p45 = scmp.ne.s32.totalorder %s33, %s34
      %p46 = scmp.eq.s32.totalorder %s17, 1
      %p47 = por %p45, %p46
      %p49 = scmp.ne.s32.totalorder %s34, %s48
      %p50 = scmp.eq.s32.totalorder %s17, 0
      %p51 = por %p49, %p50
      %s52 = sadd.s32 %s18, %s19
      %s53 = sadd.s32 %s30, %s26
      %s54 = ssub.s32 %s52, %s53
      %p55 = scmp.eq.s32.totalorder %s54, 0
      %s57 = sadd.s32 %s56, 1
      %s58 = scalar_select %p55, %s56, %s57
      %p61 = pneg %p55
      %p62 = scmp.eq.s32.totalorder %s11, 1
      %p63 = por %p61, %p62
      %p64 = scmp.ne.s32.totalorder %s56, %s59
      %p65 = scmp.eq.s32.totalorder %s11, 0
      %p66 = por %p64, %p65
      %p67 = scmp.ne.s32.totalorder %s56, %s59
      %p68 = scmp.eq.s32.totalorder %s16, 1
      %p69 = por %p67, %p68
      %p70 = scmp.ne.s32.totalorder %s59, %s60
      %p71 = scmp.eq.s32.totalorder %s16, 0
      %p72 = por %p70, %p71
      %p73 = scmp.ne.s32.totalorder %s59, %s60
      %p74 = scmp.eq.s32.totalorder %s17, 1
      %p75 = por %p73, %p74
      %p77 = scmp.ne.s32.totalorder %s60, %s76
      %p78 = scmp.eq.s32.totalorder %s17, 0
      %p79 = por %p77, %p78
      %s80 = sadd.s32 %s18, %s19
      %s81 = sadd.s32 %s30, %s26
      %s82 = ssub.s32 %s80, %s81
      %p83 = scmp.eq.s32.totalorder %s82, 0
      %s85 = sadd.s32 %s84, 1
      %s86 = scalar_select %p83, %s84, %s85
      %p89 = pneg %p83
      %p90 = scmp.eq.s32.totalorder %s11, 1
      %p91 = por %p89, %p90
      %p92 = scmp.ne.s32.totalorder %s84, %s87
      %p93 = scmp.eq.s32.totalorder %s11, 0
      %p94 = por %p92, %p93
      %p95 = scmp.ne.s32.totalorder %s84, %s87
      %p96 = scmp.eq.s32.totalorder %s16, 1
      %p97 = por %p95, %p96
      %p98 = scmp.ne.s32.totalorder %s87, %s88
      %p99 = scmp.eq.s32.totalorder %s16, 0
      %p100 = por %p98, %p99
      %p101 = scmp.ne.s32.totalorder %s87, %s88
      %p102 = scmp.eq.s32.totalorder %s17, 1
      %p103 = por %p101, %p102
      %p105 = scmp.ne.s32.totalorder %s88, %s104
      %p106 = scmp.eq.s32.totalorder %s17, 0
      %p107 = por %p105, %p106
      %s109 = sadd.s32 %s108, 1
      %p112 = scmp.eq.s32.totalorder %s11, 1
      %p113 = scmp.ne.s32.totalorder %s108, %s110
      %p114 = scmp.eq.s32.totalorder %s11, 0
      %p115 = por %p113, %p114
      %p116 = scmp.ne.s32.totalorder %s108, %s110
      %p117 = scmp.eq.s32.totalorder %s16, 1
      %p118 = por %p116, %p117
      %p119 = scmp.ne.s32.totalorder %s110, %s111
      %p120 = scmp.eq.s32.totalorder %s16, 0
      %p121 = por %p119, %p120
      %p122 = scmp.ne.s32.totalorder %s110, %s111
      %p123 = scmp.eq.s32.totalorder %s17, 1
      %p124 = por %p122, %p123
      %p126 = scmp.ne.s32.totalorder %s111, %s125
      %p127 = scmp.eq.s32.totalorder %s17, 0
      %p128 = por %p126, %p127
      %s130 = sadd.s32 %s129, 1
      %p133 = scmp.eq.s32.totalorder %s11, 1
      %p134 = scmp.ne.s32.totalorder %s129, %s131
      %p135 = scmp.eq.s32.totalorder %s11, 0
      %p136 = por %p134, %p135
      %p137 = scmp.ne.s32.totalorder %s129, %s131
      %p138 = scmp.eq.s32.totalorder %s16, 1
      %p139 = por %p137, %p138
      %p140 = scmp.ne.s32.totalorder %s131, %s132
      %p141 = scmp.eq.s32.totalorder %s16, 0
      %p142 = por %p140, %p141
      %p143 = scmp.ne.s32.totalorder %s131, %s132
      %p144 = scmp.eq.s32.totalorder %s17, 1
      %p145 = por %p143, %p144
      %p147 = scmp.ne.s32.totalorder %s132, %s146
      %p148 = scmp.eq.s32.totalorder %s17, 0
      %p149 = por %p147, %p148
      %s151 = sadd.s32 %s150, 1
      %p154 = scmp.eq.s32.totalorder %s11, 1
      %p155 = scmp.ne.s32.totalorder %s150, %s152
      %p156 = scmp.eq.s32.totalorder %s11, 0
      %p157 = por %p155, %p156
      %p158 = scmp.ne.s32.totalorder %s150, %s152
      %p159 = scmp.eq.s32.totalorder %s16, 1
      %p160 = por %p158, %p159
      %p161 = scmp.ne.s32.totalorder %s152, %s153
      %p162 = scmp.eq.s32.totalorder %s16, 0
      %p163 = por %p161, %p162
      %p164 = scmp.ne.s32.totalorder %s152, %s153
      %p165 = scmp.eq.s32.totalorder %s17, 1
      %p166 = por %p164, %p165
      %p168 = scmp.ne.s32.totalorder %s153, %s167
      %p169 = scmp.eq.s32.totalorder %s17, 0
      %p170 = por %p168, %p169
      %p171 = scmp.le.s32.totalorder 1, %s11
      %p172 = scmp.lt.s32.totalorder %s11, 3
      %p173 = pnand %p171, %p172
      %p174 = pneg %p173
      // Predicated region
      $region9: #{class_model_encoder_forward.11} parent=5 // pred_check
        _
      $region10: #{class_model_encoder_forward.11} parent=5 // pred_check_branch
        %176 = sbr.rel (%p173) target = $region12
      $region11: #{class_model_encoder_forward.11} parent=5 // pred_region
        %s177 = ssub.s32 %s11, 1
        // Predicated region
        $region13: #{class_model_encoder_forward.11} parent=11 // pred_check
          %p178 = pneg %p44
        $region14: #{class_model_encoder_forward.11} parent=11 // pred_check_branch
          %180 = sbr.rel (%p178) target = $region16
        $region15: #{class_model_encoder_forward.11} parent=11 // pred_region
          _
        $region16: #{class_model_encoder_forward.11} parent=11 // pred_fallthru
          _
        // Predicated region
        $region17: #{class_model_encoder_forward.11} parent=11 // pred_check
          %p181 = pneg %p121
        $region18: #{class_model_encoder_forward.11} parent=11 // pred_check_branch
          %183 = sbr.rel (%p181) target = $region20
        $region19: #{class_model_encoder_forward.11} parent=11 // pred_region
          _
        $region20: #{class_model_encoder_forward.11} parent=11 // pred_fallthru
          _
        // Predicated region
        $region21: #{class_model_encoder_forward.11} parent=11 // pred_check
          %p184 = pneg %p142
        $region22: #{class_model_encoder_forward.11} parent=11 // pred_check_branch
          %186 = sbr.rel (%p184) target = $region24
        $region23: #{class_model_encoder_forward.11} parent=11 // pred_region
          _
        $region24: #{class_model_encoder_forward.11} parent=11 // pred_fallthru
          _
      $region12: #{class_model_encoder_forward.11} parent=5 // pred_fallthru
        _
      %p187 = scmp.lt.s32.totalorder %s11, 2
      // Predicated region
      $region25: #{class_model_encoder_forward.11} parent=5 // pred_check
        %p188 = pneg %p187
      $region26: #{class_model_encoder_forward.11} parent=5 // pred_check_branch
        %190 = sbr.rel (%p188) target = $region28
      $region27: #{class_model_encoder_forward.11} parent=5 // pred_region
        // Predicated region
        $region29: #{class_model_encoder_forward.11} parent=27 // pred_check
          %p191 = pneg %p66
        $region30: #{class_model_encoder_forward.11} parent=27 // pred_check_branch
          %193 = sbr.rel (%p191) target = $region32
        $region31: #{class_model_encoder_forward.11} parent=27 // pred_region
          %s194 = sand.u32 %s56, 1
          %s195 = sand.u32 %s56, 1
          %s196 = smul.addr %s195, 128
          %s197 = scalar_lea.vmem [#allocation3], %s196
          %s198 = sadd.s32 %s18, %s19
          %s199 = smul.addr %s198, 4
          %s200 = scalar_lea.vmem %s1, %s199
          // Predicated region
          $region33: #{class_model_encoder_forward.11} parent=31 // pred_check
            _
          $region34: #{class_model_encoder_forward.11} parent=31 // pred_check_branch
            %202 = sbr.rel (0) target = $region36
          $region35: #{class_model_encoder_forward.11} parent=31 // pred_region
            // Predicated region
            $region37: #{class_model_encoder_forward.11} parent=35 // pred_check
              _
            $region38: #{class_model_encoder_forward.11} parent=35 // pred_check_branch
              %204 = sbr.rel target = $region40
            $region39: #{class_model_encoder_forward.11} parent=35 // pred_region
              // Predicated region
              $region52: #{class_model_encoder_forward.11} parent=39 // pred_check
                _
              $region53: #{class_model_encoder_forward.11} parent=39 // pred_check_branch
                %282 = sbr.rel (0) target = $region55
              $region54: #{class_model_encoder_forward.11} parent=39 // pred_region
                loop: start=0, step=1, limit=1
                $region56: #{class_model_encoder_forward.11} parent=54 // loop_pre_header
                  _
                $region57: #{class_model_encoder_forward.11} parent=54 // loop_header
                  %s284 = sphi 0, %s288
                  %p285 = scmp.ge.s32.totalorder %s284, 1
                  %s289 = sphi %s200, %s200
                  %s290 = sphi %s197, %s197
                $region58: #{class_model_encoder_forward.11} parent=54 // loop_header_branch
                  %287 = sbr.rel (%p285) target = $region62
                $region59: #{class_model_encoder_forward.11} parent=54 // loop_body
                  _
                $region60: #{class_model_encoder_forward.11} parent=54 // loop_footer
                  %s288 = sadd.s32 1, %s284
                $region61: #{class_model_encoder_forward.11} parent=54 // loop_footer_branch
                  %283 = sbr.rel target = $region57
                $region62: #{class_model_encoder_forward.11} parent=54 // loop_exit
                  _
                %s292 = ssub.s32 16, 1
                loop: start=0, step=1, limit=1
                $region63: #{class_model_encoder_forward.11} parent=54 // loop_pre_header
                  _
                $region64: #{class_model_encoder_forward.11} parent=54 // loop_header
                  %s294 = sphi 0, %s298
                  %p295 = scmp.ge.s32.totalorder %s294, 1
                  %s299 = sphi %s200, %s200
                  %s300 = sphi %s197, %s197
                $region65: #{class_model_encoder_forward.11} parent=54 // loop_header_branch
                  %297 = sbr.rel (%p295) target = $region69
                $region66: #{class_model_encoder_forward.11} parent=54 // loop_body
                  %v301 = vld [vmem:[%s299] sm:%s292]
                  %302 = vst [vmem:[%s300] sm:%s292] %v301
                  %v303 = vld [vmem:[%s299 + $0x8] sm:%s292]
                  %304 = vst [vmem:[%s300 + $0x4] sm:%s292] %v303
                  %v305 = vld [vmem:[%s299 + $0x10] sm:%s292]
                  %306 = vst [vmem:[%s300 + $0x8] sm:%s292] %v305
                  %v307 = vld [vmem:[%s299 + $0x18] sm:%s292]
                  %308 = vst [vmem:[%s300 + $0xc] sm:%s292] %v307
                  %v309 = vld [vmem:[%s299 + $0x20] sm:%s292]
                  %310 = vst [vmem:[%s300 + $0x10] sm:%s292] %v309
                  %v311 = vld [vmem:[%s299 + $0x28] sm:%s292]
                  %312 = vst [vmem:[%s300 + $0x14] sm:%s292] %v311
                  %v313 = vld [vmem:[%s299 + $0x30] sm:%s292]
                  %314 = vst [vmem:[%s300 + $0x18] sm:%s292] %v313
                  %v315 = vld [vmem:[%s299 + $0x38] sm:%s292]
                  %316 = vst [vmem:[%s300 + $0x1c] sm:%s292] %v315
                  %v317 = vld [vmem:[%s299 + $0x40] sm:%s292]
                  %318 = vst [vmem:[%s300 + $0x20] sm:%s292] %v317
                  %v319 = vld [vmem:[%s299 + $0x48] sm:%s292]
                  %320 = vst [vmem:[%s300 + $0x24] sm:%s292] %v319
                  %v321 = vld [vmem:[%s299 + $0x50] sm:%s292]
                  %322 = vst [vmem:[%s300 + $0x28] sm:%s292] %v321
                  %v323 = vld [vmem:[%s299 + $0x58] sm:%s292]
                  %324 = vst [vmem:[%s300 + $0x2c] sm:%s292] %v323
                  %v325 = vld [vmem:[%s299 + $0x60] sm:%s292]
                  %326 = vst [vmem:[%s300 + $0x30] sm:%s292] %v325
                  %v327 = vld [vmem:[%s299 + $0x68] sm:%s292]
                  %328 = vst [vmem:[%s300 + $0x34] sm:%s292] %v327
                  %v329 = vld [vmem:[%s299 + $0x70] sm:%s292]
                  %330 = vst [vmem:[%s300 + $0x38] sm:%s292] %v329
                  %v331 = vld [vmem:[%s299 + $0x78] sm:%s292]
                  %332 = vst [vmem:[%s300 + $0x3c] sm:%s292] %v331
                  %v333 = vld [vmem:[%s299 + $0x80] sm:%s292]
                  %334 = vst [vmem:[%s300 + $0x40] sm:%s292] %v333
                  %v335 = vld [vmem:[%s299 + $0x88] sm:%s292]
                  %336 = vst [vmem:[%s300 + $0x44] sm:%s292] %v335
                  %v337 = vld [vmem:[%s299 + $0x90] sm:%s292]
                  %338 = vst [vmem:[%s300 + $0x48] sm:%s292] %v337
                  %v339 = vld [vmem:[%s299 + $0x98] sm:%s292]
                  %340 = vst [vmem:[%s300 + $0x4c] sm:%s292] %v339
                  %v341 = vld [vmem:[%s299 + $0xa0] sm:%s292]
                  %342 = vst [vmem:[%s300 + $0x50] sm:%s292] %v341
                  %v343 = vld [vmem:[%s299 + $0xa8] sm:%s292]
                  %344 = vst [vmem:[%s300 + $0x54] sm:%s292] %v343
                  %v345 = vld [vmem:[%s299 + $0xb0] sm:%s292]
                  %346 = vst [vmem:[%s300 + $0x58] sm:%s292] %v345
                  %v347 = vld [vmem:[%s299 + $0xb8] sm:%s292]
                  %348 = vst [vmem:[%s300 + $0x5c] sm:%s292] %v347
                  %v349 = vld [vmem:[%s299 + $0xc0] sm:%s292]
                  %350 = vst [vmem:[%s300 + $0x60] sm:%s292] %v349
                  %v351 = vld [vmem:[%s299 + $0xc8] sm:%s292]
                  %352 = vst [vmem:[%s300 + $0x64] sm:%s292] %v351
                  %v353 = vld [vmem:[%s299 + $0xd0] sm:%s292]
                  %354 = vst [vmem:[%s300 + $0x68] sm:%s292] %v353
                  %v355 = vld [vmem:[%s299 + $0xd8] sm:%s292]
                  %356 = vst [vmem:[%s300 + $0x6c] sm:%s292] %v355
                  %v357 = vld [vmem:[%s299 + $0xe0] sm:%s292]
                  %358 = vst [vmem:[%s300 + $0x70] sm:%s292] %v357
                  %v359 = vld [vmem:[%s299 + $0xe8] sm:%s292]
                  %360 = vst [vmem:[%s300 + $0x74] sm:%s292] %v359
                  %v361 = vld [vmem:[%s299 + $0xf0] sm:%s292]
                  %362 = vst [vmem:[%s300 + $0x78] sm:%s292] %v361
                  %v363 = vld [vmem:[%s299 + $0xf8] sm:%s292]
                  %364 = vst [vmem:[%s300 + $0x7c] sm:%s292] %v363
                $region67: #{class_model_encoder_forward.11} parent=54 // loop_footer
                  %s298 = sadd.s32 1, %s294
                $region68: #{class_model_encoder_forward.11} parent=54 // loop_footer_branch
                  %293 = sbr.rel target = $region64
                $region69: #{class_model_encoder_forward.11} parent=54 // loop_exit
                  _
              $region55: #{class_model_encoder_forward.11} parent=39 // pred_fallthru
                _
            $region40: #{class_model_encoder_forward.11} parent=35 // pred_fallthru
              _
            // Predicated region
            $region41: #{class_model_encoder_forward.11} parent=35 // pred_check
              _
            $region42: #{class_model_encoder_forward.11} parent=35 // pred_check_branch
              %206 = sbr.rel (0) target = $region44
            $region43: #{class_model_encoder_forward.11} parent=35 // pred_region
              %s208 = ssub.s32 16, 1
              loop: start=0, step=1, limit=1
              $region45: #{class_model_encoder_forward.11} parent=43 // loop_pre_header
                _
              $region46: #{class_model_encoder_forward.11} parent=43 // loop_header
                %s210 = sphi 0, %s214
                %p211 = scmp.ge.s32.totalorder %s210, 1
                %s215 = sphi %s200, %s200
                %s216 = sphi %s197, %s197
              $region47: #{class_model_encoder_forward.11} parent=43 // loop_header_branch
                %213 = sbr.rel (%p211) target = $region51
              $region48: #{class_model_encoder_forward.11} parent=43 // loop_body
                %v217 = vld [vmem:[%s215] sm:%s208]
                %218 = vst [vmem:[%s216] sm:%s208] %v217
                %v219 = vld [vmem:[%s215 + $0x8] sm:%s208]
                %220 = vst [vmem:[%s216 + $0x4] sm:%s208] %v219
                %v221 = vld [vmem:[%s215 + $0x10] sm:%s208]
                %222 = vst [vmem:[%s216 + $0x8] sm:%s208] %v221
                %v223 = vld [vmem:[%s215 + $0x18] sm:%s208]
                %224 = vst [vmem:[%s216 + $0xc] sm:%s208] %v223
                %v225 = vld [vmem:[%s215 + $0x20] sm:%s208]
                %226 = vst [vmem:[%s216 + $0x10] sm:%s208] %v225
                %v227 = vld [vmem:[%s215 + $0x28] sm:%s208]
                %228 = vst [vmem:[%s216 + $0x14] sm:%s208] %v227
                %v229 = vld [vmem:[%s215 + $0x30] sm:%s208]
                %230 = vst [vmem:[%s216 + $0x18] sm:%s208] %v229
                %v231 = vld [vmem:[%s215 + $0x38] sm:%s208]
                %232 = vst [vmem:[%s216 + $0x1c] sm:%s208] %v231
                %v233 = vld [vmem:[%s215 + $0x40] sm:%s208]
                %234 = vst [vmem:[%s216 + $0x20] sm:%s208] %v233
                %v235 = vld [vmem:[%s215 + $0x48] sm:%s208]
                %236 = vst [vmem:[%s216 + $0x24] sm:%s208] %v235
                %v237 = vld [vmem:[%s215 + $0x50] sm:%s208]
                %238 = vst [vmem:[%s216 + $0x28] sm:%s208] %v237
                %v239 = vld [vmem:[%s215 + $0x58] sm:%s208]
                %240 = vst [vmem:[%s216 + $0x2c] sm:%s208] %v239
                %v241 = vld [vmem:[%s215 + $0x60] sm:%s208]
                %242 = vst [vmem:[%s216 + $0x30] sm:%s208] %v241
                %v243 = vld [vmem:[%s215 + $0x68] sm:%s208]
                %244 = vst [vmem:[%s216 + $0x34] sm:%s208] %v243
                %v245 = vld [vmem:[%s215 + $0x70] sm:%s208]
                %246 = vst [vmem:[%s216 + $0x38] sm:%s208] %v245
                %v247 = vld [vmem:[%s215 + $0x78] sm:%s208]
                %248 = vst [vmem:[%s216 + $0x3c] sm:%s208] %v247
                %v249 = vld [vmem:[%s215 + $0x80] sm:%s208]
                %250 = vst [vmem:[%s216 + $0x40] sm:%s208] %v249
                %v251 = vld [vmem:[%s215 + $0x88] sm:%s208]
                %252 = vst [vmem:[%s216 + $0x44] sm:%s208] %v251
                %v253 = vld [vmem:[%s215 + $0x90] sm:%s208]
                %254 = vst [vmem:[%s216 + $0x48] sm:%s208] %v253
                %v255 = vld [vmem:[%s215 + $0x98] sm:%s208]
                %256 = vst [vmem:[%s216 + $0x4c] sm:%s208] %v255
                %v257 = vld [vmem:[%s215 + $0xa0] sm:%s208]
                %258 = vst [vmem:[%s216 + $0x50] sm:%s208] %v257
                %v259 = vld [vmem:[%s215 + $0xa8] sm:%s208]
                %260 = vst [vmem:[%s216 + $0x54] sm:%s208] %v259
                %v261 = vld [vmem:[%s215 + $0xb0] sm:%s208]
                %262 = vst [vmem:[%s216 + $0x58] sm:%s208] %v261
                %v263 = vld [vmem:[%s215 + $0xb8] sm:%s208]
                %264 = vst [vmem:[%s216 + $0x5c] sm:%s208] %v263
                %v265 = vld [vmem:[%s215 + $0xc0] sm:%s208]
                %266 = vst [vmem:[%s216 + $0x60] sm:%s208] %v265
                %v267 = vld [vmem:[%s215 + $0xc8] sm:%s208]
                %268 = vst [vmem:[%s216 + $0x64] sm:%s208] %v267
                %v269 = vld [vmem:[%s215 + $0xd0] sm:%s208]
                %270 = vst [vmem:[%s216 + $0x68] sm:%s208] %v269
                %v271 = vld [vmem:[%s215 + $0xd8] sm:%s208]
                %272 = vst [vmem:[%s216 + $0x6c] sm:%s208] %v271
                %v273 = vld [vmem:[%s215 + $0xe0] sm:%s208]
                %274 = vst [vmem:[%s216 + $0x70] sm:%s208] %v273
                %v275 = vld [vmem:[%s215 + $0xe8] sm:%s208]
                %276 = vst [vmem:[%s216 + $0x74] sm:%s208] %v275
                %v277 = vld [vmem:[%s215 + $0xf0] sm:%s208]
                %278 = vst [vmem:[%s216 + $0x78] sm:%s208] %v277
                %v279 = vld [vmem:[%s215 + $0xf8] sm:%s208]
                %280 = vst [vmem:[%s216 + $0x7c] sm:%s208] %v279
              $region49: #{class_model_encoder_forward.11} parent=43 // loop_footer
                %s214 = sadd.s32 1, %s210
              $region50: #{class_model_encoder_forward.11} parent=43 // loop_footer_branch
                %209 = sbr.rel target = $region46
              $region51: #{class_model_encoder_forward.11} parent=43 // loop_exit
                _
            $region44: #{class_model_encoder_forward.11} parent=35 // pred_fallthru
              _
          $region36: #{class_model_encoder_forward.11} parent=31 // pred_fallthru
            _
          %365 = vnop
        $region32: #{class_model_encoder_forward.11} parent=27 // pred_fallthru
          _
        // Predicated region
        $region70: #{class_model_encoder_forward.11} parent=27 // pred_check
          %p366 = pneg %p94
        $region71: #{class_model_encoder_forward.11} parent=27 // pred_check_branch
          %368 = sbr.rel (%p366) target = $region73
        $region72: #{class_model_encoder_forward.11} parent=27 // pred_region
          %s369 = sand.u32 %s84, 1
          %s370 = sand.u32 %s84, 1
          %s371 = smul.addr %s370, 32
          %s372 = scalar_lea.vmem [#allocation4], %s371
          %s373 = sadd.s32 %s18, %s19
          %s374 = smul.addr %s373, 4
          %s375 = scalar_lea.vmem %s2, %s374
          // Predicated region
          $region74: #{class_model_encoder_forward.11} parent=72 // pred_check
            _
          $region75: #{class_model_encoder_forward.11} parent=72 // pred_check_branch
            %377 = sbr.rel (0) target = $region77
          $region76: #{class_model_encoder_forward.11} parent=72 // pred_region
            // Predicated region
            $region78: #{class_model_encoder_forward.11} parent=76 // pred_check
              _
            $region79: #{class_model_encoder_forward.11} parent=76 // pred_check_branch
              %379 = sbr.rel target = $region81
            $region80: #{class_model_encoder_forward.11} parent=76 // pred_region
              // Predicated region
              $region93: #{class_model_encoder_forward.11} parent=80 // pred_check
                _
              $region94: #{class_model_encoder_forward.11} parent=80 // pred_check_branch
                %409 = sbr.rel (0) target = $region96
              $region95: #{class_model_encoder_forward.11} parent=80 // pred_region
                loop: start=0, step=1, limit=1
                $region97: #{class_model_encoder_forward.11} parent=95 // loop_pre_header
                  _
                $region98: #{class_model_encoder_forward.11} parent=95 // loop_header
                  %s411 = sphi 0, %s415
                  %p412 = scmp.ge.s32.totalorder %s411, 1
                  %s416 = sphi %s375, %s375
                  %s417 = sphi %s372, %s372
                $region99: #{class_model_encoder_forward.11} parent=95 // loop_header_branch
                  %414 = sbr.rel (%p412) target = $region103
                $region100: #{class_model_encoder_forward.11} parent=95 // loop_body
                  _
                $region101: #{class_model_encoder_forward.11} parent=95 // loop_footer
                  %s415 = sadd.s32 1, %s411
                $region102: #{class_model_encoder_forward.11} parent=95 // loop_footer_branch
                  %410 = sbr.rel target = $region98
                $region103: #{class_model_encoder_forward.11} parent=95 // loop_exit
                  _
                %s419 = ssub.s32 16, 1
                loop: start=0, step=1, limit=1
                $region104: #{class_model_encoder_forward.11} parent=95 // loop_pre_header
                  _
                $region105: #{class_model_encoder_forward.11} parent=95 // loop_header
                  %s421 = sphi 0, %s425
                  %p422 = scmp.ge.s32.totalorder %s421, 1
                  %s426 = sphi %s375, %s375
                  %s427 = sphi %s372, %s372
                $region106: #{class_model_encoder_forward.11} parent=95 // loop_header_branch
                  %424 = sbr.rel (%p422) target = $region110
                $region107: #{class_model_encoder_forward.11} parent=95 // loop_body
                  %v428 = vld [vmem:[%s426] sm:%s419]
                  %429 = vst [vmem:[%s427] sm:%s419] %v428
                  %v430 = vld [vmem:[%s426 + $0x8] sm:%s419]
                  %431 = vst [vmem:[%s427 + $0x4] sm:%s419] %v430
                  %v432 = vld [vmem:[%s426 + $0x10] sm:%s419]
                  %433 = vst [vmem:[%s427 + $0x8] sm:%s419] %v432
                  %v434 = vld [vmem:[%s426 + $0x18] sm:%s419]
                  %435 = vst [vmem:[%s427 + $0xc] sm:%s419] %v434
                  %v436 = vld [vmem:[%s426 + $0x20] sm:%s419]
                  %437 = vst [vmem:[%s427 + $0x10] sm:%s419] %v436
                  %v438 = vld [vmem:[%s426 + $0x28] sm:%s419]
                  %439 = vst [vmem:[%s427 + $0x14] sm:%s419] %v438
                  %v440 = vld [vmem:[%s426 + $0x30] sm:%s419]
                  %441 = vst [vmem:[%s427 + $0x18] sm:%s419] %v440
                  %v442 = vld [vmem:[%s426 + $0x38] sm:%s419]
                  %443 = vst [vmem:[%s427 + $0x1c] sm:%s419] %v442
                $region108: #{class_model_encoder_forward.11} parent=95 // loop_footer
                  %s425 = sadd.s32 1, %s421
                $region109: #{class_model_encoder_forward.11} parent=95 // loop_footer_branch
                  %420 = sbr.rel target = $region105
                $region110: #{class_model_encoder_forward.11} parent=95 // loop_exit
                  _
              $region96: #{class_model_encoder_forward.11} parent=80 // pred_fallthru
                _
            $region81: #{class_model_encoder_forward.11} parent=76 // pred_fallthru
              _
            // Predicated region
            $region82: #{class_model_encoder_forward.11} parent=76 // pred_check
              _
            $region83: #{class_model_encoder_forward.11} parent=76 // pred_check_branch
              %381 = sbr.rel (0) target = $region85
            $region84: #{class_model_encoder_forward.11} parent=76 // pred_region
              %s383 = ssub.s32 16, 1
              loop: start=0, step=1, limit=1
              $region86: #{class_model_encoder_forward.11} parent=84 // loop_pre_header
                _
              $region87: #{class_model_encoder_forward.11} parent=84 // loop_header
                %s385 = sphi 0, %s389
                %p386 = scmp.ge.s32.totalorder %s385, 1
                %s390 = sphi %s375, %s375
                %s391 = sphi %s372, %s372
              $region88: #{class_model_encoder_forward.11} parent=84 // loop_header_branch
                %388 = sbr.rel (%p386) target = $region92
              $region89: #{class_model_encoder_forward.11} parent=84 // loop_body
                %v392 = vld [vmem:[%s390] sm:%s383]
                %393 = vst [vmem:[%s391] sm:%s383] %v392
                %v394 = vld [vmem:[%s390 + $0x8] sm:%s383]
                %395 = vst [vmem:[%s391 + $0x4] sm:%s383] %v394
                %v396 = vld [vmem:[%s390 + $0x10] sm:%s383]
                %397 = vst [vmem:[%s391 + $0x8] sm:%s383] %v396
                %v398 = vld [vmem:[%s390 + $0x18] sm:%s383]
                %399 = vst [vmem:[%s391 + $0xc] sm:%s383] %v398
                %v400 = vld [vmem:[%s390 + $0x20] sm:%s383]
                %401 = vst [vmem:[%s391 + $0x10] sm:%s383] %v400
                %v402 = vld [vmem:[%s390 + $0x28] sm:%s383]
                %403 = vst [vmem:[%s391 + $0x14] sm:%s383] %v402
                %v404 = vld [vmem:[%s390 + $0x30] sm:%s383]
                %405 = vst [vmem:[%s391 + $0x18] sm:%s383] %v404
                %v406 = vld [vmem:[%s390 + $0x38] sm:%s383]
                %407 = vst [vmem:[%s391 + $0x1c] sm:%s383] %v406
              $region90: #{class_model_encoder_forward.11} parent=84 // loop_footer
                %s389 = sadd.s32 1, %s385
              $region91: #{class_model_encoder_forward.11} parent=84 // loop_footer_branch
                %384 = sbr.rel target = $region87
              $region92: #{class_model_encoder_forward.11} parent=84 // loop_exit
                _
            $region85: #{class_model_encoder_forward.11} parent=76 // pred_fallthru
              _
          $region77: #{class_model_encoder_forward.11} parent=72 // pred_fallthru
            _
          %444 = vnop
        $region73: #{class_model_encoder_forward.11} parent=27 // pred_fallthru
          _
      $region28: #{class_model_encoder_forward.11} parent=5 // pred_fallthru
        _
      %p445 = scmp.le.s32.totalorder 1, %s11
      %p446 = scmp.lt.s32.totalorder %s11, 3
      %p447 = pnand %p445, %p446
      %p448 = pneg %p447
      // Predicated region
      $region111: #{class_model_encoder_forward.11} parent=5 // pred_check
        _
      $region112: #{class_model_encoder_forward.11} parent=5 // pred_check_branch
        %450 = sbr.rel (%p447) target = $region114
      $region113: #{class_model_encoder_forward.11} parent=5 // pred_region
        %s451 = ssub.s32 %s11, 1
        %s452 = sand.u32 %s59, 1
        %s453 = sand.u32 %s59, 1
        %s454 = smul.addr %s453, 128
        %s455 = scalar_lea.vmem [#allocation3], %s454
        // Predicated region
        $region115: #{class_model_encoder_forward.11} parent=113 // pred_check
          %p456 = pneg %p72
        $region116: #{class_model_encoder_forward.11} parent=113 // pred_check_branch
          %458 = sbr.rel (%p456) target = $region118
        $region117: #{class_model_encoder_forward.11} parent=113 // pred_region
          _
        $region118: #{class_model_encoder_forward.11} parent=113 // pred_fallthru
          _
        %s459 = sand.u32 %s87, 1
        %s460 = sand.u32 %s87, 1
        %s461 = smul.addr %s460, 32
        %s462 = scalar_lea.vmem [#allocation4], %s461
        // Predicated region
        $region119: #{class_model_encoder_forward.11} parent=113 // pred_check
          %p463 = pneg %p100
        $region120: #{class_model_encoder_forward.11} parent=113 // pred_check_branch
          %465 = sbr.rel (%p463) target = $region122
        $region121: #{class_model_encoder_forward.11} parent=113 // pred_region
          _
        $region122: #{class_model_encoder_forward.11} parent=113 // pred_fallthru
          _
        %p466 = pneg %p44
        %p467 = pneg %p41
        %s468 = sand.u32 %s59, 1
        %s469 = sand.u32 %s59, 1
        %s470 = smul.addr %s469, 128
        %s471 = scalar_lea.vmem [#allocation3], %s470
        %p472 = pneg %p72
        %p473 = pneg %p69
        %s474 = sand.u32 %s87, 1
        %s475 = sand.u32 %s87, 1
        %s476 = smul.addr %s475, 32
        %s477 = scalar_lea.vmem [#allocation4], %s476
        %p478 = pneg %p100
        %p479 = pneg %p97
        %p480 = pneg %p121
        %p481 = pneg %p118
        %p482 = pneg %p142
        %p483 = pneg %p139
        %p484 = pneg %p163
        %p485 = pneg %p160
        %s486 = sadd.s32 %s20, %s21
        %s487 = sadd.s32 %s20, %s21
        %p488 = scmp.eq.s32.totalorder %s20, 0
        %p489 = scmp.eq.s32.totalorder %s21, 0
        %p490 = pnand %p488, %p489
        %p491 = pneg %p490
        // Predicated region
        $region123: #{class_model_encoder_forward.11} parent=113 // pred_check
          _
        $region124: #{class_model_encoder_forward.11} parent=113 // pred_check_branch
          %493 = sbr.rel (%p490) target = $region126
        $region125: #{class_model_encoder_forward.11} parent=113 // pred_region
          %vm494 = vcmask 15360
          %495 = vst.msk [vmem:[#allocation2] sm:$0xff] %vm494, 0.0
          %496 = vst.msk [vmem:[#allocation2 + $0x8] sm:$0xff] %vm494, 0.0
          %497 = vst.msk [vmem:[#allocation2 + $0x10] sm:$0xff] %vm494, 0.0
          %498 = vst.msk [vmem:[#allocation2 + $0x18] sm:$0xff] %vm494, 0.0
          %499 = vst.msk [vmem:[#allocation2 + $0x20] sm:$0xff] %vm494, 0.0
          %500 = vst.msk [vmem:[#allocation2 + $0x28] sm:$0xff] %vm494, 0.0
          %501 = vst.msk [vmem:[#allocation2 + $0x30] sm:$0xff] %vm494, 0.0
          %502 = vst.msk [vmem:[#allocation2 + $0x38] sm:$0xff] %vm494, 0.0
        $region126: #{class_model_encoder_forward.11} parent=113 // pred_fallthru
          _
        %v503 = vld [vmem:[%s0] sm:$0xff]
        %v504 = vld [vmem:[%s0 + $0x8] sm:$0xff]
        %v505 = vld [vmem:[%s0 + $0x10] sm:$0xff]
        %v506 = vld [vmem:[%s0 + $0x18] sm:$0xff]
        %v507 = vld [vmem:[%s0 + $0x20] sm:$0xff]
        %v508 = vld [vmem:[%s0 + $0x28] sm:$0xff]
        %v509 = vld [vmem:[%s0 + $0x30] sm:$0xff]
        %v510 = vld [vmem:[%s0 + $0x38] sm:$0xff]
        %v511 = vld [vmem:[%s455] sm:$0xf]
        %v512 = vld [vmem:[%s455 + $0x4] sm:$0xf]
        %v513 = vld [vmem:[%s455 + $0x8] sm:$0xf]
        %v514 = vld [vmem:[%s455 + $0xc] sm:$0xf]
        %v515 = vld [vmem:[%s455 + $0x10] sm:$0xf]
        %v516 = vld [vmem:[%s455 + $0x14] sm:$0xf]
        %v517 = vld [vmem:[%s455 + $0x18] sm:$0xf]
        %v518 = vld [vmem:[%s455 + $0x1c] sm:$0xf]
        %v519 = vld [vmem:[%s455 + $0x20] sm:$0xf]
        %v520 = vld [vmem:[%s455 + $0x24] sm:$0xf]
        %v521 = vld [vmem:[%s455 + $0x28] sm:$0xf]
        %v522 = vld [vmem:[%s455 + $0x2c] sm:$0xf]
        %v523 = vld [vmem:[%s455 + $0x30] sm:$0xf]
        %v524 = vld [vmem:[%s455 + $0x34] sm:$0xf]
        %v525 = vld [vmem:[%s455 + $0x38] sm:$0xf]
        %v526 = vld [vmem:[%s455 + $0x3c] sm:$0xf]
        %v527 = vld [vmem:[%s455 + $0x40] sm:$0xf]
        %v528 = vld [vmem:[%s455 + $0x44] sm:$0xf]
        %v529 = vld [vmem:[%s455 + $0x48] sm:$0xf]
        %v530 = vld [vmem:[%s455 + $0x4c] sm:$0xf]
        %v531 = vld [vmem:[%s455 + $0x50] sm:$0xf]
        %v532 = vld [vmem:[%s455 + $0x54] sm:$0xf]
        %v533 = vld [vmem:[%s455 + $0x58] sm:$0xf]
        %v534 = vld [vmem:[%s455 + $0x5c] sm:$0xf]
        %v535 = vld [vmem:[%s455 + $0x60] sm:$0xf]
        %v536 = vld [vmem:[%s455 + $0x64] sm:$0xf]
        %v537 = vld [vmem:[%s455 + $0x68] sm:$0xf]
        %v538 = vld [vmem:[%s455 + $0x6c] sm:$0xf]
        %v539 = vld [vmem:[%s455 + $0x70] sm:$0xf]
        %v540 = vld [vmem:[%s455 + $0x74] sm:$0xf]
        %v541 = vld [vmem:[%s455 + $0x78] sm:$0xf]
        %v542 = vld [vmem:[%s455 + $0x7c] sm:$0xf]
        %v543 = vld [vmem:[%s462] sm:$0xf]
        %v544 = vld [vmem:[%s462 + $0x4] sm:$0xf]
        %v545 = vld [vmem:[%s462 + $0x8] sm:$0xf]
        %v546 = vld [vmem:[%s462 + $0xc] sm:$0xf]
        %v547 = vld [vmem:[%s462 + $0x10] sm:$0xf]
        %v548 = vld [vmem:[%s462 + $0x14] sm:$0xf]
        %v549 = vld [vmem:[%s462 + $0x18] sm:$0xf]
        %v550 = vld [vmem:[%s462 + $0x1c] sm:$0xf]
        %v551 = vunpack.c.l.bf16 %v543
        %v552 = vunpack.c.l.bf16 %v544
        %v553 = vunpack.c.l.bf16 %v545
        %v554 = vunpack.c.l.bf16 %v546
        %v555 = vunpack.c.l.bf16 %v547
        %v556 = vunpack.c.l.bf16 %v548
        %v557 = vunpack.c.l.bf16 %v549
        %v558 = vunpack.c.l.bf16 %v550
        %v567 = vunpack.c.l.b16 %v503
        %v568 = vunpack.c.h.b16 %v503
        %v569 = vunpack.c.l.b16 %v504
        %v570 = vunpack.c.h.b16 %v504
        %v571 = vunpack.c.l.b16 %v505
        %v572 = vunpack.c.h.b16 %v505
        %v573 = vunpack.c.l.b16 %v506
        %v574 = vunpack.c.h.b16 %v506
        %v575 = vunpack.c.l.b16 %v507
        %v576 = vunpack.c.h.b16 %v507
        %v577 = vunpack.c.l.b16 %v508
        %v578 = vunpack.c.h.b16 %v508
        %v579 = vunpack.c.l.b16 %v509
        %v580 = vunpack.c.h.b16 %v509
        %v581 = vunpack.c.l.b16 %v510
        %v582 = vunpack.c.h.b16 %v510
        %v583 = vpack.c.b16 %v569, %v567
        %v584 = vpack.c.b16 %v570, %v568
        %v585 = vpack.c.b16 %v573, %v571
        %v586 = vpack.c.b16 %v574, %v572
        %v587 = vpack.c.b16 %v577, %v575
        %v588 = vpack.c.b16 %v578, %v576
        %v589 = vpack.c.b16 %v581, %v579
        %v590 = vpack.c.b16 %v582, %v580
        %v631 = vunpack.c.l.b16 %v511
        %v632 = vunpack.c.l.b16 %v512
        %v633 = vunpack.c.l.b16 %v513
        %v634 = vunpack.c.l.b16 %v514
        %v635 = vunpack.c.l.b16 %v515
        %v636 = vunpack.c.l.b16 %v516
        %v637 = vunpack.c.l.b16 %v517
        %v638 = vunpack.c.l.b16 %v518
        %v639 = vunpack.c.l.b16 %v519
        %v640 = vunpack.c.l.b16 %v520
        %v641 = vunpack.c.l.b16 %v521
        %v642 = vunpack.c.l.b16 %v522
        %v643 = vunpack.c.l.b16 %v523
        %v644 = vunpack.c.l.b16 %v524
        %v645 = vunpack.c.l.b16 %v525
        %v646 = vunpack.c.l.b16 %v526
        %v647 = vunpack.c.l.b16 %v527
        %v648 = vunpack.c.l.b16 %v528
        %v649 = vunpack.c.l.b16 %v529
        %v650 = vunpack.c.l.b16 %v530
        %v651 = vunpack.c.l.b16 %v531
        %v652 = vunpack.c.l.b16 %v532
        %v653 = vunpack.c.l.b16 %v533
        %v654 = vunpack.c.l.b16 %v534
        %v655 = vunpack.c.l.b16 %v535
        %v656 = vunpack.c.l.b16 %v536
        %v657 = vunpack.c.l.b16 %v537
        %v658 = vunpack.c.l.b16 %v538
        %v659 = vunpack.c.l.b16 %v539
        %v660 = vunpack.c.l.b16 %v540
        %v661 = vunpack.c.l.b16 %v541
        %v662 = vunpack.c.l.b16 %v542
        %v663 = vpack.c.b16 %v632, %v631
        %v664 = vpack.c.b16 %v634, %v633
        %v665 = vpack.c.b16 %v636, %v635
        %v666 = vpack.c.b16 %v638, %v637
        %v667 = vpack.c.b16 %v640, %v639
        %v668 = vpack.c.b16 %v642, %v641
        %v669 = vpack.c.b16 %v644, %v643
        %v670 = vpack.c.b16 %v646, %v645
        %v671 = vpack.c.b16 %v648, %v647
        %v672 = vpack.c.b16 %v650, %v649
        %v673 = vpack.c.b16 %v652, %v651
        %v674 = vpack.c.b16 %v654, %v653
        %v675 = vpack.c.b16 %v656, %v655
        %v676 = vpack.c.b16 %v658, %v657
        %v677 = vpack.c.b16 %v660, %v659
        %v678 = vpack.c.b16 %v662, %v661
        %695 = vmatpush.bf16.msra.mxu0 %v670
        %696 = vmatpush.bf16.msra.mxu0 %v669
        %697 = vmatpush.bf16.msra.mxu0 %v668
        %698 = vmatpush.bf16.msra.mxu0 %v667
        %699 = vmatpush.bf16.msra.mxu0 %v666
        %700 = vmatpush.bf16.msra.mxu0 %v665
        %701 = vmatpush.bf16.msra.mxu0 %v664
        %702 = vmatpush.bf16.msra.mxu0 %v663
        %703 = vmatmul.bf16.gmra.mxu0 %v583
        %v704 = vpop.f32.mrf.mxu0
        %v705 = vadd.f32 %v551, %v704
        %v706 = vpop.f32.mrf.mxu0
        %v707 = vadd.f32 %v552, %v706
        %708 = vmatmul.bf16.gmra.mxu0 %v585
        %v709 = vpop.f32.mrf.mxu0
        %v710 = vadd.f32 %v553, %v709
        %v711 = vpop.f32.mrf.mxu0
        %v712 = vadd.f32 %v554, %v711
        %713 = vmatmul.bf16.gmra.mxu0 %v587
        %v714 = vpop.f32.mrf.mxu0
        %v715 = vadd.f32 %v555, %v714
        %v716 = vpop.f32.mrf.mxu0
        %v717 = vadd.f32 %v556, %v716
        %718 = vmatmul.bf16.gmra.mxu0 %v589
        %v719 = vpop.f32.mrf.mxu0
        %v720 = vadd.f32 %v557, %v719
        %v721 = vpop.f32.mrf.mxu0
        %v722 = vadd.f32 %v558, %v721
        %723 = vdwg.mxu0
        %724 = vmatpush.bf16.msra.mxu0 %v678
        %725 = vmatpush.bf16.msra.mxu0 %v677
        %726 = vmatpush.bf16.msra.mxu0 %v676
        %727 = vmatpush.bf16.msra.mxu0 %v675
        %728 = vmatpush.bf16.msra.mxu0 %v674
        %729 = vmatpush.bf16.msra.mxu0 %v673
        %730 = vmatpush.bf16.msra.mxu0 %v672
        %731 = vmatpush.bf16.msra.mxu0 %v671
        %732 = vmatmul.bf16.gmra.mxu0 %v584
        %v733 = vpop.f32.mrf.mxu0
        %v734 = vadd.f32 %v705, %v733
        %v735 = vpop.f32.mrf.mxu0
        %v736 = vadd.f32 %v707, %v735
        %737 = vmatmul.bf16.gmra.mxu0 %v586
        %v738 = vpop.f32.mrf.mxu0
        %v739 = vadd.f32 %v710, %v738
        %v740 = vpop.f32.mrf.mxu0
        %v741 = vadd.f32 %v712, %v740
        %742 = vmatmul.bf16.gmra.mxu0 %v588
        %v743 = vpop.f32.mrf.mxu0
        %v744 = vadd.f32 %v715, %v743
        %v745 = vpop.f32.mrf.mxu0
        %v746 = vadd.f32 %v717, %v745
        %747 = vmatmul.bf16.gmra.mxu0 %v590
        %v748 = vpop.f32.mrf.mxu0
        %v749 = vadd.f32 %v720, %v748
        %v750 = vpop.f32.mrf.mxu0
        %v751 = vadd.f32 %v722, %v750
        %752 = vdwg.mxu0
        %v753 = vmax.f32 %v734, 0.0
        %v754 = vmax.f32 %v736, 0.0
        %v755 = vmax.f32 %v739, 0.0
        %v756 = vmax.f32 %v741, 0.0
        %v757 = vmax.f32 %v744, 0.0
        %v758 = vmax.f32 %v746, 0.0
        %v759 = vmax.f32 %v749, 0.0
        %v760 = vmax.f32 %v751, 0.0
        %761 = vadd.xlane.f32.xlu0 %v753
        %v762 = vpop.xlane.xlu0 %761
        %763 = vadd.xlane.f32.xlu0 %v754
        %v764 = vpop.xlane.xlu0 %763
        %765 = vadd.xlane.f32.xlu0 %v755
        %v766 = vpop.xlane.xlu0 %765
        %767 = vadd.xlane.f32.xlu0 %v756
        %v768 = vpop.xlane.xlu0 %767
        %769 = vadd.xlane.f32.xlu0 %v757
        %v770 = vpop.xlane.xlu0 %769
        %771 = vadd.xlane.f32.xlu0 %v758
        %v772 = vpop.xlane.xlu0 %771
        %773 = vadd.xlane.f32.xlu0 %v759
        %v774 = vpop.xlane.xlu0 %773
        %775 = vadd.xlane.f32.xlu0 %v760
        %v776 = vpop.xlane.xlu0 %775
        %v777 = vlaneseq
        %v778 = vand.u32 %v777, 127
        %v779 = vld [vmem:[#allocation2] sm:$0xff]
        %v780 = vld [vmem:[#allocation2 + $0x8] sm:$0xff]
        %v781 = vld [vmem:[#allocation2 + $0x10] sm:$0xff]
        %v782 = vld [vmem:[#allocation2 + $0x18] sm:$0xff]
        %v783 = vld [vmem:[#allocation2 + $0x20] sm:$0xff]
        %v784 = vld [vmem:[#allocation2 + $0x28] sm:$0xff]
        %v785 = vld [vmem:[#allocation2 + $0x30] sm:$0xff]
        %v786 = vld [vmem:[#allocation2 + $0x38] sm:$0xff]
        %v787 = vstv %s20
        %vm788 = vcmp.eq.s32.totalorder %v778, %v787
        %v789 = vsel %vm788, %v762, 0.0
        %v790 = vsel %vm788, %v764, 0.0
        %v791 = vsel %vm788, %v766, 0.0
        %v792 = vsel %vm788, %v768, 0.0
        %v793 = vsel %vm788, %v770, 0.0
        %v794 = vsel %vm788, %v772, 0.0
        %v795 = vsel %vm788, %v774, 0.0
        %v796 = vsel %vm788, %v776, 0.0
        %v797 = vadd.f32 %v779, %v789
        %v798 = vadd.f32 %v780, %v790
        %v799 = vadd.f32 %v781, %v791
        %v800 = vadd.f32 %v782, %v792
        %v801 = vadd.f32 %v783, %v793
        %v802 = vadd.f32 %v784, %v794
        %v803 = vadd.f32 %v785, %v795
        %v804 = vadd.f32 %v786, %v796
        %vm805 = vcmask 15360
        %806 = vst.msk [vmem:[#allocation2] sm:$0xff] %vm805, %v797
        %807 = vst.msk [vmem:[#allocation2 + $0x8] sm:$0xff] %vm805, %v798
        %808 = vst.msk [vmem:[#allocation2 + $0x10] sm:$0xff] %vm805, %v799
        %809 = vst.msk [vmem:[#allocation2 + $0x18] sm:$0xff] %vm805, %v800
        %810 = vst.msk [vmem:[#allocation2 + $0x20] sm:$0xff] %vm805, %v801
        %811 = vst.msk [vmem:[#allocation2 + $0x28] sm:$0xff] %vm805, %v802
        %812 = vst.msk [vmem:[#allocation2 + $0x30] sm:$0xff] %vm805, %v803
        %813 = vst.msk [vmem:[#allocation2 + $0x38] sm:$0xff] %vm805, %v804
        %p814 = scmp.eq.s32.totalorder %s20, 1
        %p815 = pnand %p814, %p489
        %p816 = pneg %p815
        // Predicated region
        $region127: #{class_model_encoder_forward.11} parent=113 // pred_check
          _
        $region128: #{class_model_encoder_forward.11} parent=113 // pred_check_branch
          %818 = sbr.rel (%p815) target = $region130
        $region129: #{class_model_encoder_forward.11} parent=113 // pred_region
          %v819 = vld [vmem:[#allocation2] sm:$0xff]
          %v820 = vld [vmem:[#allocation2 + $0x8] sm:$0xff]
          %v821 = vld [vmem:[#allocation2 + $0x10] sm:$0xff]
          %v822 = vld [vmem:[#allocation2 + $0x18] sm:$0xff]
          %v823 = vld [vmem:[#allocation2 + $0x20] sm:$0xff]
          %v824 = vld [vmem:[#allocation2 + $0x28] sm:$0xff]
          %v825 = vld [vmem:[#allocation2 + $0x30] sm:$0xff]
          %v826 = vld [vmem:[#allocation2 + $0x38] sm:$0xff]
          %v827 = vmul.f32 %v819, 0.0625
          %v828 = vmul.f32 %v820, 0.0625
          %v829 = vmul.f32 %v821, 0.0625
          %v830 = vmul.f32 %v822, 0.0625
          %v831 = vmul.f32 %v823, 0.0625
          %v832 = vmul.f32 %v824, 0.0625
          %v833 = vmul.f32 %v825, 0.0625
          %v834 = vmul.f32 %v826, 0.0625
          %v835 = vld [vmem:[%s3] sm:$0xff]
          %v836 = vld [vmem:[%s3 + $0x8] sm:$0xff]
          %v837 = vld [vmem:[%s3 + $0x10] sm:$0xff]
          %v838 = vld [vmem:[%s3 + $0x18] sm:$0xff]
          %v839 = vld [vmem:[%s3 + $0x20] sm:$0xff]
          %v840 = vld [vmem:[%s3 + $0x28] sm:$0xff]
          %v841 = vld [vmem:[%s3 + $0x30] sm:$0xff]
          %v842 = vld [vmem:[%s3 + $0x38] sm:$0xff]
          %v843 = vld [vmem:[%s4] sm:$0xff]
          %v844 = vld [vmem:[%s4 + $0x8] sm:$0xff]
          %v845 = vld [vmem:[%s4 + $0x10] sm:$0xff]
          %v846 = vld [vmem:[%s4 + $0x18] sm:$0xff]
          %v847 = vld [vmem:[%s4 + $0x20] sm:$0xff]
          %v848 = vld [vmem:[%s4 + $0x28] sm:$0xff]
          %v849 = vld [vmem:[%s4 + $0x30] sm:$0xff]
          %v850 = vld [vmem:[%s4 + $0x38] sm:$0xff]
          %852 = vset.pattern.permute.xlu0 0
          %853 = vperm.xlu0 %852, %v843
          %v854 = vpop.permute.xlu0 %853
          %857 = vset.pattern.permute.xlu0 0
          %858 = vperm.xlu0 %857, %v844
          %v859 = vpop.permute.xlu0 %858
          %862 = vset.pattern.permute.xlu0 0
          %863 = vperm.xlu0 %862, %v845
          %v864 = vpop.permute.xlu0 %863
          %867 = vset.pattern.permute.xlu0 0
          %868 = vperm.xlu0 %867, %v846
          %v869 = vpop.permute.xlu0 %868
          %872 = vset.pattern.permute.xlu0 0
          %873 = vperm.xlu0 %872, %v847
          %v874 = vpop.permute.xlu0 %873
          %877 = vset.pattern.permute.xlu0 0
          %878 = vperm.xlu0 %877, %v848
          %v879 = vpop.permute.xlu0 %878
          %882 = vset.pattern.permute.xlu0 0
          %883 = vperm.xlu0 %882, %v849
          %v884 = vpop.permute.xlu0 %883
          %887 = vset.pattern.permute.xlu0 0
          %888 = vperm.xlu0 %887, %v850
          %v889 = vpop.permute.xlu0 %888
          %vm891 = vcmask 523264
          %v893 = vsel %vm891, %v835, 0
          %v896 = vsel %vm891, %v836, 0
          %v899 = vsel %vm891, %v837, 0
          %v902 = vsel %vm891, %v838, 0
          %v905 = vsel %vm891, %v839, 0
          %v908 = vsel %vm891, %v840, 0
          %v911 = vsel %vm891, %v841, 0
          %v914 = vsel %vm891, %v842, 0
          %916 = vmatpush.msra.mxu0 0.0
          %917 = vmatpush.msra.mxu0 0.0
          %918 = vmatpush.msra.mxu0 0.0
          %919 = vmatpush.msra.mxu0 0.0
          %920 = vmatpush.msra.mxu0 0.0
          %921 = vmatpush.msra.mxu0 0.0
          %922 = vmatpush.msra.mxu0 0.0
          %923 = vmatpush.msra.mxu0 0.0
          %924 = vmatpush.msra.mxu0 %v834
          %925 = vmatpush.msra.mxu0 %v833
          %926 = vmatpush.msra.mxu0 %v832
          %927 = vmatpush.msra.mxu0 %v831
          %928 = vmatpush.msra.mxu0 %v830
          %929 = vmatpush.msra.mxu0 %v829
          %930 = vmatpush.msra.mxu0 %v828
          %931 = vmatpush.msra.mxu0 %v827
          %932 = vmatmul.f32.gmra.mxu0 %v893
          %v933 = vpop.f32.mrf.mxu0
          %v934 = vadd.f32 %v854, %v933
          %935 = vmatmul.f32.gmra.mxu0 %v896
          %v936 = vpop.f32.mrf.mxu0
          %v937 = vadd.f32 %v859, %v936
          %938 = vmatmul.f32.gmra.mxu0 %v899
          %v939 = vpop.f32.mrf.mxu0
          %v940 = vadd.f32 %v864, %v939
          %941 = vmatmul.f32.gmra.mxu0 %v902
          %v942 = vpop.f32.mrf.mxu0
          %v943 = vadd.f32 %v869, %v942
          %944 = vmatmul.f32.gmra.mxu0 %v905
          %v945 = vpop.f32.mrf.mxu0
          %v946 = vadd.f32 %v874, %v945
          %947 = vmatmul.f32.gmra.mxu0 %v908
          %v948 = vpop.f32.mrf.mxu0
          %v949 = vadd.f32 %v879, %v948
          %950 = vmatmul.f32.gmra.mxu0 %v911
          %v951 = vpop.f32.mrf.mxu0
          %v952 = vadd.f32 %v884, %v951
          %953 = vmatmul.f32.gmra.mxu0 %v914
          %v954 = vpop.f32.mrf.mxu0
          %v955 = vadd.f32 %v889, %v954
          %956 = vdwg.mxu0
          %957 = vst.msk [vmem:[%s5] sm:$0xff] %vm805, %v934
          %958 = vst.msk [vmem:[%s5 + $0x8] sm:$0xff] %vm805, %v937
          %959 = vst.msk [vmem:[%s5 + $0x10] sm:$0xff] %vm805, %v940
          %960 = vst.msk [vmem:[%s5 + $0x18] sm:$0xff] %vm805, %v943
          %961 = vst.msk [vmem:[%s5 + $0x20] sm:$0xff] %vm805, %v946
          %962 = vst.msk [vmem:[%s5 + $0x28] sm:$0xff] %vm805, %v949
          %963 = vst.msk [vmem:[%s5 + $0x30] sm:$0xff] %vm805, %v952
          %964 = vst.msk [vmem:[%s5 + $0x38] sm:$0xff] %vm805, %v955
        $region130: #{class_model_encoder_forward.11} parent=113 // pred_fallthru
          _
        // Predicated region
        $region131: #{class_model_encoder_forward.11} parent=113 // pred_check
          %p965 = pneg %p160
        $region132: #{class_model_encoder_forward.11} parent=113 // pred_check_branch
          %967 = sbr.rel (%p965) target = $region134
        $region133: #{class_model_encoder_forward.11} parent=113 // pred_region
          _
        $region134: #{class_model_encoder_forward.11} parent=113 // pred_fallthru
          _
        // Predicated region
        $region135: #{class_model_encoder_forward.11} parent=113 // pred_check
          %p968 = pneg %p160
        $region136: #{class_model_encoder_forward.11} parent=113 // pred_check_branch
          %970 = sbr.rel (%p968) target = $region138
        $region137: #{class_model_encoder_forward.11} parent=113 // pred_region
          _
        $region138: #{class_model_encoder_forward.11} parent=113 // pred_fallthru
          _
      $region114: #{class_model_encoder_forward.11} parent=5 // pred_fallthru
        _
      %p971 = scmp.le.s32.totalorder 2, %s11
      // Predicated region
      $region139: #{class_model_encoder_forward.11} parent=5 // pred_check
        %p972 = pneg %p971
      $region140: #{class_model_encoder_forward.11} parent=5 // pred_check_branch
        %974 = sbr.rel (%p972) target = $region142
      $region141: #{class_model_encoder_forward.11} parent=5 // pred_region
        %s975 = ssub.s32 %s11, 2
      $region142: #{class_model_encoder_forward.11} parent=5 // pred_fallthru
        _
    $region6: #{class_model_encoder_forward.11} parent=1 // loop_footer
      %s15 = sadd.s32 1, %s11
    $region7: #{class_model_encoder_forward.11} parent=1 // loop_footer_branch
      %10 = sbr.rel target = $region3
    $region8: #{class_model_encoder_forward.11} parent=1 // loop_exit
      _

</llo_original>
